<compile_context>
chip_gen: v5e
topology: v5e:2x2
jax: 0.10.0
libtpu: 0.0.40
codegen_flags: <defaults>
</compile_context>

<pallas_src>
import math
from functools import partial

import jax
import jax.numpy as jnp
from jax.experimental import pallas as pl
from jax.experimental.pallas import tpu as pltpu

# Whole-array-in-VMEM block spec (shapes are small; no grid tiling needed).
VMEM = pl.BlockSpec(memory_space=pltpu.MemorySpace.VMEM)
LN_EPS = 1e-5


def _layernorm_f32(x, g, b):
    mu = jnp.mean(x, axis=-1, keepdims=True)
    var = jnp.mean(jnp.square(x - mu), axis=-1, keepdims=True)
    return (x - mu) * jax.lax.rsqrt(var + LN_EPS) * g + b


# --------------------------------------------------------------------------
# Fused kernels
# --------------------------------------------------------------------------
def _dense_ln_kernel(x_ref, w_ref, b_ref, g_ref, beta_ref, o_ref):
    # Linear(768 -> E) + LayerNorm, one kernel.
    x = x_ref[...].astype(jnp.bfloat16)
    y = jnp.dot(x, w_ref[...], preferred_element_type=jnp.float32) + b_ref[...]
    o_ref[...] = _layernorm_f32(y, g_ref[...], beta_ref[...]).astype(o_ref.dtype)


def _block_kernel(x_ref, in_w_ref, in_b_ref, out_w_ref, out_b_ref,
                  g_ref, beta_ref, o_ref, *, B, S, num_heads):
    # Whole residual_block: MHA(x, x, x) -> +x -> LayerNorm, one kernel.
    E = x_ref.shape[-1]
    Dh = E // num_heads
    scale = 1.0 / math.sqrt(Dh)

    x_f32 = x_ref[...].astype(jnp.float32)            # (B*S, E) residual
    x_bf = x_f32.astype(jnp.bfloat16)

    # Fused QKV projection (bf16 operands, f32 MXU accumulation).
    qkv = jnp.dot(x_bf, in_w_ref[...],
                  preferred_element_type=jnp.float32) + in_b_ref[...]   # (B*S, 3E)

    out_w = out_w_ref[...]                            # (E, E) bf16
    att = jnp.zeros((B * S, E), jnp.float32)
    for h in range(num_heads):                        # static unroll, H small
        lo = h * Dh
        # Head split via static lane slices of the fused qkv (free addressing).
        q = qkv[:, lo:lo + Dh].reshape(B, S, Dh).astype(jnp.bfloat16)
        k = qkv[:, E + lo:E + lo + Dh].reshape(B, S, Dh).astype(jnp.bfloat16)
        v = qkv[:, 2 * E + lo:2 * E + lo + Dh].reshape(B, S, Dh).astype(jnp.bfloat16)

        s = jnp.einsum("bqd,bkd->bqk", q, k,
                       preferred_element_type=jnp.float32) * scale
        s = s - jnp.max(s, axis=-1, keepdims=True)
        p = jnp.exp(s)
        p = p * pl.reciprocal(jnp.sum(p, axis=-1, keepdims=True), approx=True)
        o_h = jnp.einsum("bqk,bkd->bqd", p.astype(jnp.bfloat16), v,
                         preferred_element_type=jnp.float32)            # (B, S, Dh)

        # Output projection accumulated per head (no lane concat of heads).
        att += jnp.dot(o_h.reshape(B * S, Dh).astype(jnp.bfloat16),
                       out_w[lo:lo + Dh, :],
                       preferred_element_type=jnp.float32)
    att += out_b_ref[...]

    y = att + x_f32                                   # residual add
    o_ref[...] = _layernorm_f32(y, g_ref[...], beta_ref[...]).astype(o_ref.dtype)


def _tail_kernel(win_ref, w1_ref, b1_ref, w2_ref, b2_ref, o_ref):
    # MaxPool2d(4) + ReLU + Flatten + Linear + Linear, one kernel.
    # win: [B, (S//4)*(E//4), 16]  (16 = the 4x4 pooling window, packed outside)
    x = win_ref[...].astype(jnp.float32)
    pooled = jnp.maximum(jnp.max(x, axis=-1), 0.0)    # MaxPool2d(4) + ReLU == Flatten input
    z = jnp.dot(pooled.astype(jnp.bfloat16), w1_ref[...],
                preferred_element_type=jnp.float32) + b1_ref[...]
    logits = jnp.dot(z.astype(jnp.bfloat16), w2_ref[...],
                     preferred_element_type=jnp.float32) + b2_ref[...]
    o_ref[...] = logits.astype(o_ref.dtype)


# --------------------------------------------------------------------------
# Thin wrappers around pallas_call (4 launches per forward pass total)
# --------------------------------------------------------------------------
def dense_layernorm(x2d, p):
    M = x2d.shape[0]
    E = p["dense_w"].shape[1]
    return pl.pallas_call(
        _dense_ln_kernel,
        out_shape=jax.ShapeDtypeStruct((M, E), jnp.float32),
        in_specs=[VMEM] * 5,
        out_specs=VMEM,
    )(x2d, p["dense_w"], p["dense_b"], p["ln_g"], p["ln_b"])


def attention_block(h2d, blk, *, B, S, num_heads):
    M, E = h2d.shape
    return pl.pallas_call(
        partial(_block_kernel, B=B, S=S, num_heads=num_heads),
        out_shape=jax.ShapeDtypeStruct((M, E), jnp.float32),
        in_specs=[VMEM] * 7,
        out_specs=VMEM,
    )(h2d, blk["in_w"], blk["in_b"], blk["out_w"], blk["out_b"],
      blk["ln_g"], blk["ln_b"])


def classifier_tail(h, p):
    B, S, E = h.shape
    S4, E4 = S // 4, E // 4
    # TODO(synk): the 4x4 window packing stays as one XLA reshape/transpose —
    # doing it in-kernel needs a lane-splitting reshape that Mosaic does not
    # reliably lower at these sub-tile shapes; everything downstream is fused.
    win = (h.reshape(B, S4, 4, E4, 4)
            .transpose(0, 1, 3, 2, 4)
            .reshape(B, S4 * E4, 16))
    C = p["cls2_w"].shape[1]
    return pl.pallas_call(
        _tail_kernel,
        out_shape=jax.ShapeDtypeStruct((B, C), jnp.float32),
        in_specs=[VMEM] * 5,
        out_specs=VMEM,
    )(win, p["cls1_w"], p["cls1_b"], p["cls2_w"], p["cls2_b"])


def fomc_forward(x, params, *, num_heads):
    # x: [B, 1, S, 768] -> squeeze(axis=1) -> [B, S, 768] (safe for B == 1)
    x = jnp.squeeze(x, axis=1)
    B, S, _ = x.shape

    h = dense_layernorm(x.reshape(B * S, 768), params)   # dense + LN (+dropout=id)
    for blk in params["blocks"]:
        h = attention_block(h, blk, B=B, S=S, num_heads=num_heads)

    return classifier_tail(h.reshape(B, S, -1), params)


# --------------------------------------------------------------------------
# Deterministic parameter init (weights stored as [in, out] bf16; y = x @ W + b)
# --------------------------------------------------------------------------
def init_params(key, embed_dim, n_att_mod, num_classes, seq_len):
    E = embed_dim
    n_keys = 6 + 4 * n_att_mod
    keys = iter(jax.random.split(key, n_keys))

    def nrm(shape, dtype=jnp.float32, scale=0.02):
        return (scale * jax.random.normal(next(keys), shape)).astype(dtype)

    bf16 = jnp.bfloat16
    params = {
        "dense_w": nrm((768, E), bf16),
        "dense_b": nrm((1, E)),
        "ln_g": jnp.ones((1, E), jnp.float32),
        "ln_b": jnp.zeros((1, E), jnp.float32),
        "blocks": [],
    }
    for _ in range(n_att_mod):
        params["blocks"].append({
            "in_w": nrm((E, 3 * E), bf16),     # fused q,k,v projection
            "in_b": nrm((1, 3 * E)),
            "out_w": nrm((E, E), bf16),
            "out_b": nrm((1, E)),
            "ln_g": jnp.ones((1, E), jnp.float32),
            "ln_b": jnp.zeros((1, E), jnp.float32),
        })
    # module hardcodes in_features=12288 (S*E/16 in the original); scaled here
    flat_in = (seq_len // 4) * (E // 4)
    params["cls1_w"] = nrm((flat_in, E), bf16)
    params["cls1_b"] = nrm((1, E))
    params["cls2_w"] = nrm((E, num_classes), bf16)
    params["cls2_b"] = nrm((1, num_classes))
    return params


if __name__ == "__main__":
    B, S, E, H = 2, 16, 32, 4
    n_att_mod, num_classes = 2, 3

    key = jax.random.PRNGKey(0)
    kx, kp = jax.random.split(key)
    x = jax.random.normal(kx, (B, 1, S, 768), dtype=jnp.float32)
    params = init_params(kp, E, n_att_mod, num_classes, S)

    fwd = jax.jit(partial(fomc_forward, num_heads=H))
    out = fwd(x, params)
    jax.block_until_ready(out)
    assert out.shape == (B, num_classes), out.shape
    assert bool(jnp.all(jnp.isfinite(out)))
    print("KERNEL_OK")
</pallas_src>

<mosaic_0001>
module attributes {stable_mosaic.version = 11 : i64} {
  func.func @_dense_ln_kernel(%arg0: memref<32x768xf32, #tpu.memory_space<vmem>>, %arg1: memref<768x32xbf16, #tpu.memory_space<vmem>>, %arg2: memref<1x32xf32, #tpu.memory_space<vmem>>, %arg3: memref<1x32xf32, #tpu.memory_space<vmem>>, %arg4: memref<1x32xf32, #tpu.memory_space<vmem>>, %arg5: memref<32x32xf32, #tpu.memory_space<vmem>>) attributes {dimension_semantics = [], scalar_prefetch = 0 : i64, scratch_operands = 0 : i64, tpu.core_type = #tpu.core_type<tc>} {
    %c0 = arith.constant 0 : index
    %c0_0 = arith.constant 0 : index
    %0 = vector.load %arg0[%c0, %c0_0] : memref<32x768xf32, #tpu.memory_space<vmem>>, vector<32x768xf32>
    %1 = arith.truncf %0 : vector<32x768xf32> to vector<32x768xbf16>
    %c0_1 = arith.constant 0 : index
    %c0_2 = arith.constant 0 : index
    %2 = vector.load %arg1[%c0_1, %c0_2] : memref<768x32xbf16, #tpu.memory_space<vmem>>, vector<768x32xbf16>
    %cst = arith.constant dense<0.000000e+00> : vector<32x32xf32>
    %3 = tpu.matmul %1, %2, %cst {dimension_numbers = #tpu.dot_dimension_numbers<[1], [0], [0], [1], [0, 0, 1, 1], [], []>} : vector<32x768xbf16>, vector<768x32xbf16>, vector<32x32xf32> -> vector<32x32xf32>
    %c0_3 = arith.constant 0 : index
    %c0_4 = arith.constant 0 : index
    %4 = vector.load %arg2[%c0_3, %c0_4] : memref<1x32xf32, #tpu.memory_space<vmem>>, vector<1x32xf32>
    %5 = vector.broadcast %4 : vector<1x32xf32> to vector<32x32xf32>
    %6 = arith.addf %3, %5 : vector<32x32xf32>
    %c0_5 = arith.constant 0 : index
    %c0_6 = arith.constant 0 : index
    %7 = vector.load %arg3[%c0_5, %c0_6] : memref<1x32xf32, #tpu.memory_space<vmem>>, vector<1x32xf32>
    %c0_7 = arith.constant 0 : index
    %c0_8 = arith.constant 0 : index
    %8 = vector.load %arg4[%c0_7, %c0_8] : memref<1x32xf32, #tpu.memory_space<vmem>>, vector<1x32xf32>
    %cst_9 = arith.constant dense<0.000000e+00> : vector<32xf32>
    %9 = vector.multi_reduction <add>, %6, %cst_9 [1] : vector<32x32xf32> to vector<32xf32>
    %10 = vector.shape_cast %9 : vector<32xf32> to vector<32x1xf32>
    %cst_10 = arith.constant 3.200000e+01 : f32
    %11 = vector.broadcast %cst_10 : f32 to vector<32x1xf32>
    %12 = arith.divf %10, %11 : vector<32x1xf32>
    %13 = vector.broadcast %12 : vector<32x1xf32> to vector<32x32xf32>
    %14 = arith.subf %6, %13 : vector<32x32xf32>
    %15 = arith.mulf %14, %14 : vector<32x32xf32>
    %cst_11 = arith.constant dense<0.000000e+00> : vector<32xf32>
    %16 = vector.multi_reduction <add>, %15, %cst_11 [1] : vector<32x32xf32> to vector<32xf32>
    %17 = vector.shape_cast %16 : vector<32xf32> to vector<32x1xf32>
    %cst_12 = arith.constant 3.200000e+01 : f32
    %18 = vector.broadcast %cst_12 : f32 to vector<32x1xf32>
    %19 = arith.divf %17, %18 : vector<32x1xf32>
    %20 = vector.broadcast %12 : vector<32x1xf32> to vector<32x32xf32>
    %21 = arith.subf %6, %20 : vector<32x32xf32>
    %cst_13 = arith.constant 9.99999974E-6 : f32
    %22 = vector.broadcast %cst_13 : f32 to vector<32x1xf32>
    %23 = arith.addf %19, %22 : vector<32x1xf32>
    %24 = math.rsqrt %23 : vector<32x1xf32>
    %25 = vector.broadcast %24 : vector<32x1xf32> to vector<32x32xf32>
    %26 = arith.mulf %21, %25 : vector<32x32xf32>
    %27 = vector.broadcast %7 : vector<1x32xf32> to vector<32x32xf32>
    %28 = arith.mulf %26, %27 : vector<32x32xf32>
    %29 = vector.broadcast %8 : vector<1x32xf32> to vector<32x32xf32>
    %30 = arith.addf %28, %29 : vector<32x32xf32>
    %c0_14 = arith.constant 0 : index
    %c0_15 = arith.constant 0 : index
    %31 = vector.load %arg5[%c0_14, %c0_15] : memref<32x32xf32, #tpu.memory_space<vmem>>, vector<32x32xf32>
    tpu.vector_store %arg5[%c0_14, %c0_15], %30 {strides = array<i32>} : memref<32x32xf32, #tpu.memory_space<vmem>>, vector<32x32xf32>,
    return
  }
}

module attributes {stable_mosaic.version = 11 : i64} {
  func.func @_block_kernel(%arg0: memref<32x32xf32, #tpu.memory_space<vmem>>, %arg1: memref<32x96xbf16, #tpu.memory_space<vmem>>, %arg2: memref<1x96xf32, #tpu.memory_space<vmem>>, %arg3: memref<32x32xbf16, #tpu.memory_space<vmem>>, %arg4: memref<1x32xf32, #tpu.memory_space<vmem>>, %arg5: memref<1x32xf32, #tpu.memory_space<vmem>>, %arg6: memref<1x32xf32, #tpu.memory_space<vmem>>, %arg7: memref<32x32xf32, #tpu.memory_space<vmem>>) attributes {dimension_semantics = [], scalar_prefetch = 0 : i64, scratch_operands = 0 : i64, tpu.core_type = #tpu.core_type<tc>} {
    %c0 = arith.constant 0 : index
    %c0_0 = arith.constant 0 : index
    %0 = vector.load %arg0[%c0, %c0_0] : memref<32x32xf32, #tpu.memory_space<vmem>>, vector<32x32xf32>
    %1 = arith.truncf %0 : vector<32x32xf32> to vector<32x32xbf16>
    %c0_1 = arith.constant 0 : index
    %c0_2 = arith.constant 0 : index
    %2 = vector.load %arg1[%c0_1, %c0_2] : memref<32x96xbf16, #tpu.memory_space<vmem>>, vector<32x96xbf16>
    %cst = arith.constant dense<0.000000e+00> : vector<32x96xf32>
    %3 = tpu.matmul %1, %2, %cst {dimension_numbers = #tpu.dot_dimension_numbers<[1], [0], [0], [1], [0, 0, 1, 1], [], []>} : vector<32x32xbf16>, vector<32x96xbf16>, vector<32x96xf32> -> vector<32x96xf32>
    %c0_3 = arith.constant 0 : index
    %c0_4 = arith.constant 0 : index
    %4 = vector.load %arg2[%c0_3, %c0_4] : memref<1x96xf32, #tpu.memory_space<vmem>>, vector<1x96xf32>
    %5 = vector.broadcast %4 : vector<1x96xf32> to vector<32x96xf32>
    %6 = arith.addf %3, %5 : vector<32x96xf32>
    %c0_5 = arith.constant 0 : index
    %c0_6 = arith.constant 0 : index
    %7 = vector.load %arg3[%c0_5, %c0_6] : memref<32x32xbf16, #tpu.memory_space<vmem>>, vector<32x32xbf16>
    %cst_7 = arith.constant 0.000000e+00 : f32
    %8 = vector.broadcast %cst_7 : f32 to vector<32x32xf32>
    %9 = vector.extract_strided_slice %6 {offsets = [0, 0], sizes = [32, 8], strides = [1, 1]} : vector<32x96xf32> to vector<32x8xf32>
    %10 = vector.shape_cast %9 : vector<32x8xf32> to vector<2x16x8xf32>
    %11 = arith.truncf %10 : vector<2x16x8xf32> to vector<2x16x8xbf16>
    %12 = vector.extract_strided_slice %6 {offsets = [0, 32], sizes = [32, 8], strides = [1, 1]} : vector<32x96xf32> to vector<32x8xf32>
    %13 = vector.shape_cast %12 : vector<32x8xf32> to vector<2x16x8xf32>
    %14 = arith.truncf %13 : vector<2x16x8xf32> to vector<2x16x8xbf16>
    %15 = vector.extract_strided_slice %6 {offsets = [0, 64], sizes = [32, 8], strides = [1, 1]} : vector<32x96xf32> to vector<32x8xf32>
    %16 = vector.shape_cast %15 : vector<32x8xf32> to vector<2x16x8xf32>
    %17 = arith.truncf %16 : vector<2x16x8xf32> to vector<2x16x8xbf16>
    "tpu.trace_start"() <{level = 10 : i32, message = "bqd,bkd->bqk"}> : () -> ()
    %cst_8 = arith.constant dense<0.000000e+00> : vector<2x16x16xf32>
    %18 = tpu.matmul %11, %14, %cst_8 {dimension_numbers = #tpu.dot_dimension_numbers<[2], [2], [1], [1], [0, 0, 0, 1, 1, 1], [0], [0]>} : vector<2x16x8xbf16>, vector<2x16x8xbf16>, vector<2x16x16xf32> -> vector<2x16x16xf32>
    "tpu.trace_stop"() : () -> ()
    %cst_9 = arith.constant 0.353553385 : f32
    %19 = vector.broadcast %cst_9 : f32 to vector<2x16x16xf32>
    %20 = arith.mulf %18, %19 : vector<2x16x16xf32>
    %cst_10 = arith.constant dense<0xFF800000> : vector<2x16xf32>
    %21 = vector.multi_reduction <maximumf>, %20, %cst_10 [2] : vector<2x16x16xf32> to vector<2x16xf32>
    %22 = vector.shape_cast %21 : vector<2x16xf32> to vector<2x16x1xf32>
    %23 = vector.broadcast %22 : vector<2x16x1xf32> to vector<2x16x16xf32>
    %24 = arith.subf %20, %23 : vector<2x16x16xf32>
    %25 = math.exp %24 : vector<2x16x16xf32>
    %cst_11 = arith.constant dense<0.000000e+00> : vector<2x16xf32>
    %26 = vector.multi_reduction <add>, %25, %cst_11 [2] : vector<2x16x16xf32> to vector<2x16xf32>
    %27 = vector.shape_cast %26 : vector<2x16xf32> to vector<2x16x1xf32>
    %28 = tpu.reciprocal %27 {approx = true} : vector<2x16x1xf32> -> vector<2x16x1xf32>
    %29 = vector.broadcast %28 : vector<2x16x1xf32> to vector<2x16x16xf32>
    %30 = arith.mulf %25, %29 : vector<2x16x16xf32>
    %31 = arith.truncf %30 : vector<2x16x16xf32> to vector<2x16x16xbf16>
    "tpu.trace_start"() <{level = 10 : i32, message = "bqk,bkd->bqd"}> : () -> ()
    %cst_12 = arith.constant dense<0.000000e+00> : vector<2x16x8xf32>
    %32 = tpu.matmul %31, %17, %cst_12 {dimension_numbers = #tpu.dot_dimension_numbers<[2], [1], [1], [2], [0, 0, 0, 1, 1, 2], [0], [0]>} : vector<2x16x16xbf16>, vector<2x16x8xbf16>, vector<2x16x8xf32> -> vector<2x16x8xf32>
    "tpu.trace_stop"() : () -> ()
    %33 = vector.shape_cast %32 : vector<2x16x8xf32> to vector<32x8xf32>
    %34 = arith.truncf %33 : vector<32x8xf32> to vector<32x8xbf16>
    %35 = vector.extract_strided_slice %7 {offsets = [0, 0], sizes = [8, 32], strides = [1, 1]} : vector<32x32xbf16> to vector<8x32xbf16>
    %cst_13 = arith.constant dense<0.000000e+00> : vector<32x32xf32>
    %36 = tpu.matmul %34, %35, %cst_13 {dimension_numbers = #tpu.dot_dimension_numbers<[1], [0], [0], [1], [0, 0, 1, 1], [], []>} : vector<32x8xbf16>, vector<8x32xbf16>, vector<32x32xf32> -> vector<32x32xf32>
    %37 = arith.addf %8, %36 : vector<32x32xf32>
    %38 = vector.extract_strided_slice %6 {offsets = [0, 8], sizes = [32, 8], strides = [1, 1]} : vector<32x96xf32> to vector<32x8xf32>
    %39 = vector.shape_cast %38 : vector<32x8xf32> to vector<2x16x8xf32>
    %40 = arith.truncf %39 : vector<2x16x8xf32> to vector<2x16x8xbf16>
    %41 = vector.extract_strided_slice %6 {offsets = [0, 40], sizes = [32, 8], strides = [1, 1]} : vector<32x96xf32> to vector<32x8xf32>
    %42 = vector.shape_cast %41 : vector<32x8xf32> to vector<2x16x8xf32>
    %43 = arith.truncf %42 : vector<2x16x8xf32> to vector<2x16x8xbf16>
    %44 = vector.extract_strided_slice %6 {offsets = [0, 72], sizes = [32, 8], strides = [1, 1]} : vector<32x96xf32> to vector<32x8xf32>
    %45 = vector.shape_cast %44 : vector<32x8xf32> to vector<2x16x8xf32>
    %46 = arith.truncf %45 : vector<2x16x8xf32> to vector<2x16x8xbf16>
    "tpu.trace_start"() <{level = 10 : i32, message = "bqd,bkd->bqk"}> : () -> ()
    %cst_14 = arith.constant dense<0.000000e+00> : vector<2x16x16xf32>
    %47 = tpu.matmul %40, %43, %cst_14 {dimension_numbers = #tpu.dot_dimension_numbers<[2], [2], [1], [1], [0, 0, 0, 1, 1, 1], [0], [0]>} : vector<2x16x8xbf16>, vector<2x16x8xbf16>, vector<2x16x16xf32> -> vector<2x16x16xf32>
    "tpu.trace_stop"() : () -> ()
    %cst_15 = arith.constant 0.353553385 : f32
    %48 = vector.broadcast %cst_15 : f32 to vector<2x16x16xf32>
    %49 = arith.mulf %47, %48 : vector<2x16x16xf32>
    %cst_16 = arith.constant dense<0xFF800000> : vector<2x16xf32>
    %50 = vector.multi_reduction <maximumf>, %49, %cst_16 [2] : vector<2x16x16xf32> to vector<2x16xf32>
    %51 = vector.shape_cast %50 : vector<2x16xf32> to vector<2x16x1xf32>
    %52 = vector.broadcast %51 : vector<2x16x1xf32> to vector<2x16x16xf32>
    %53 = arith.subf %49, %52 : vector<2x16x16xf32>
    %54 = math.exp %53 : vector<2x16x16xf32>
    %cst_17 = arith.constant dense<0.000000e+00> : vector<2x16xf32>
    %55 = vector.multi_reduction <add>, %54, %cst_17 [2] : vector<2x16x16xf32> to vector<2x16xf32>
    %56 = vector.shape_cast %55 : vector<2x16xf32> to vector<2x16x1xf32>
    %57 = tpu.reciprocal %56 {approx = true} : vector<2x16x1xf32> -> vector<2x16x1xf32>
    %58 = vector.broadcast %57 : vector<2x16x1xf32> to vector<2x16x16xf32>
    %59 = arith.mulf %54, %58 : vector<2x16x16xf32>
    %60 = arith.truncf %59 : vector<2x16x16xf32> to vector<2x16x16xbf16>
    "tpu.trace_start"() <{level = 10 : i32, message = "bqk,bkd->bqd"}> : () -> ()
    %cst_18 = arith.constant dense<0.000000e+00> : vector<2x16x8xf32>
    %61 = tpu.matmul %60, %46, %cst_18 {dimension_numbers = #tpu.dot_dimension_numbers<[2], [1], [1], [2], [0, 0, 0, 1, 1, 2], [0], [0]>} : vector<2x16x16xbf16>, vector<2x16x8xbf16>, vector<2x16x8xf32> -> vector<2x16x8xf32>
    "tpu.trace_stop"() : () -> ()
    %62 = vector.shape_cast %61 : vector<2x16x8xf32> to vector<32x8xf32>
    %63 = arith.truncf %62 : vector<32x8xf32> to vector<32x8xbf16>
    %64 = vector.extract_strided_slice %7 {offsets = [8, 0], sizes = [8, 32], strides = [1, 1]} : vector<32x32xbf16> to vector<8x32xbf16>
    %cst_19 = arith.constant dense<0.000000e+00> : vector<32x32xf32>
    %65 = tpu.matmul %63, %64, %cst_19 {dimension_numbers = #tpu.dot_dimension_numbers<[1], [0], [0], [1], [0, 0, 1, 1], [], []>} : vector<32x8xbf16>, vector<8x32xbf16>, vector<32x32xf32> -> vector<32x32xf32>
    %66 = arith.addf %37, %65 : vector<32x32xf32>
    %67 = vector.extract_strided_slice %6 {offsets = [0, 16], sizes = [32, 8], strides = [1, 1]} : vector<32x96xf32> to vector<32x8xf32>
    %68 = vector.shape_cast %67 : vector<32x8xf32> to vector<2x16x8xf32>
    %69 = arith.truncf %68 : vector<2x16x8xf32> to vector<2x16x8xbf16>
    %70 = vector.extract_strided_slice %6 {offsets = [0, 48], sizes = [32, 8], strides = [1, 1]} : vector<32x96xf32> to vector<32x8xf32>
    %71 = vector.shape_cast %70 : vector<32x8xf32> to vector<2x16x8xf32>
    %72 = arith.truncf %71 : vector<2x16x8xf32> to vector<2x16x8xbf16>
    %73 = vector.extract_strided_slice %6 {offsets = [0, 80], sizes = [32, 8], strides = [1, 1]} : vector<32x96xf32> to vector<32x8xf32>
    %74 = vector.shape_cast %73 : vector<32x8xf32> to vector<2x16x8xf32>
    %75 = arith.truncf %74 : vector<2x16x8xf32> to vector<2x16x8xbf16>
    "tpu.trace_start"() <{level = 10 : i32, message = "bqd,bkd->bqk"}> : () -> ()
    %cst_20 = arith.constant dense<0.000000e+00> : vector<2x16x16xf32>
    %76 = tpu.matmul %69, %72, %cst_20 {dimension_numbers = #tpu.dot_dimension_numbers<[2], [2], [1], [1], [0, 0, 0, 1, 1, 1], [0], [0]>} : vector<2x16x8xbf16>, vector<2x16x8xbf16>, vector<2x16x16xf32> -> vector<2x16x16xf32>
    "tpu.trace_stop"() : () -> ()
    %cst_21 = arith.constant 0.353553385 : f32
    %77 = vector.broadcast %cst_21 : f32 to vector<2x16x16xf32>
    %78 = arith.mulf %76, %77 : vector<2x16x16xf32>
    %cst_22 = arith.constant dense<0xFF800000> : vector<2x16xf32>
    %79 = vector.multi_reduction <maximumf>, %78, %cst_22 [2] : vector<2x16x16xf32> to vector<2x16xf32>
    %80 = vector.shape_cast %79 : vector<2x16xf32> to vector<2x16x1xf32>
    %81 = vector.broadcast %80 : vector<2x16x1xf32> to vector<2x16x16xf32>
    %82 = arith.subf %78, %81 : vector<2x16x16xf32>
    %83 = math.exp %82 : vector<2x16x16xf32>
    %cst_23 = arith.constant dense<0.000000e+00> : vector<2x16xf32>
    %84 = vector.multi_reduction <add>, %83, %cst_23 [2] : vector<2x16x16xf32> to vector<2x16xf32>
    %85 = vector.shape_cast %84 : vector<2x16xf32> to vector<2x16x1xf32>
    %86 = tpu.reciprocal %85 {approx = true} : vector<2x16x1xf32> -> vector<2x16x1xf32>
    %87 = vector.broadcast %86 : vector<2x16x1xf32> to vector<2x16x16xf32>
    %88 = arith.mulf %83, %87 : vector<2x16x16xf32>
    %89 = arith.truncf %88 : vector<2x16x16xf32> to vector<2x16x16xbf16>
    "tpu.trace_start"() <{level = 10 : i32, message = "bqk,bkd->bqd"}> : () -> ()
    %cst_24 = arith.constant dense<0.000000e+00> : vector<2x16x8xf32>
    %90 = tpu.matmul %89, %75, %cst_24 {dimension_numbers = #tpu.dot_dimension_numbers<[2], [1], [1], [2], [0, 0, 0, 1, 1, 2], [0], [0]>} : vector<2x16x16xbf16>, vector<2x16x8xbf16>, vector<2x16x8xf32> -> vector<2x16x8xf32>
    "tpu.trace_stop"() : () -> ()
    %91 = vector.shape_cast %90 : vector<2x16x8xf32> to vector<32x8xf32>
    %92 = arith.truncf %91 : vector<32x8xf32> to vector<32x8xbf16>
    %93 = vector.extract_strided_slice %7 {offsets = [16, 0], sizes = [8, 32], strides = [1, 1]} : vector<32x32xbf16> to vector<8x32xbf16>
    %cst_25 = arith.constant dense<0.000000e+00> : vector<32x32xf32>
    %94 = tpu.matmul %92, %93, %cst_25 {dimension_numbers = #tpu.dot_dimension_numbers<[1], [0], [0], [1], [0, 0, 1, 1], [], []>} : vector<32x8xbf16>, vector<8x32xbf16>, vector<32x32xf32> -> vector<32x32xf32>
    %95 = arith.addf %66, %94 : vector<32x32xf32>
    %96 = vector.extract_strided_slice %6 {offsets = [0, 24], sizes = [32, 8], strides = [1, 1]} : vector<32x96xf32> to vector<32x8xf32>
    %97 = vector.shape_cast %96 : vector<32x8xf32> to vector<2x16x8xf32>
    %98 = arith.truncf %97 : vector<2x16x8xf32> to vector<2x16x8xbf16>
    %99 = vector.extract_strided_slice %6 {offsets = [0, 56], sizes = [32, 8], strides = [1, 1]} : vector<32x96xf32> to vector<32x8xf32>
    %100 = vector.shape_cast %99 : vector<32x8xf32> to vector<2x16x8xf32>
    %101 = arith.truncf %100 : vector<2x16x8xf32> to vector<2x16x8xbf16>
    %102 = vector.extract_strided_slice %6 {offsets = [0, 88], sizes = [32, 8], strides = [1, 1]} : vector<32x96xf32> to vector<32x8xf32>
    %103 = vector.shape_cast %102 : vector<32x8xf32> to vector<2x16x8xf32>
    %104 = arith.truncf %103 : vector<2x16x8xf32> to vector<2x16x8xbf16>
    "tpu.trace_start"() <{level = 10 : i32, message = "bqd,bkd->bqk"}> : () -> ()
    %cst_26 = arith.constant dense<0.000000e+00> : vector<2x16x16xf32>
    %105 = tpu.matmul %98, %101, %cst_26 {dimension_numbers = #tpu.dot_dimension_numbers<[2], [2], [1], [1], [0, 0, 0, 1, 1, 1], [0], [0]>} : vector<2x16x8xbf16>, vector<2x16x8xbf16>, vector<2x16x16xf32> -> vector<2x16x16xf32>
    "tpu.trace_stop"() : () -> ()
    %cst_27 = arith.constant 0.353553385 : f32
    %106 = vector.broadcast %cst_27 : f32 to vector<2x16x16xf32>
    %107 = arith.mulf %105, %106 : vector<2x16x16xf32>
    %cst_28 = arith.constant dense<0xFF800000> : vector<2x16xf32>
    %108 = vector.multi_reduction <maximumf>, %107, %cst_28 [2] : vector<2x16x16xf32> to vector<2x16xf32>
    %109 = vector.shape_cast %108 : vector<2x16xf32> to vector<2x16x1xf32>
    %110 = vector.broadcast %109 : vector<2x16x1xf32> to vector<2x16x16xf32>
    %111 = arith.subf %107, %110 : vector<2x16x16xf32>
    %112 = math.exp %111 : vector<2x16x16xf32>
    %cst_29 = arith.constant dense<0.000000e+00> : vector<2x16xf32>
    %113 = vector.multi_reduction <add>, %112, %cst_29 [2] : vector<2x16x16xf32> to vector<2x16xf32>
    %114 = vector.shape_cast %113 : vector<2x16xf32> to vector<2x16x1xf32>
    %115 = tpu.reciprocal %114 {approx = true} : vector<2x16x1xf32> -> vector<2x16x1xf32>
    %116 = vector.broadcast %115 : vector<2x16x1xf32> to vector<2x16x16xf32>
    %117 = arith.mulf %112, %116 : vector<2x16x16xf32>
    %118 = arith.truncf %117 : vector<2x16x16xf32> to vector<2x16x16xbf16>
    "tpu.trace_start"() <{level = 10 : i32, message = "bqk,bkd->bqd"}> : () -> ()
    %cst_30 = arith.constant dense<0.000000e+00> : vector<2x16x8xf32>
    %119 = tpu.matmul %118, %104, %cst_30 {dimension_numbers = #tpu.dot_dimension_numbers<[2], [1], [1], [2], [0, 0, 0, 1, 1, 2], [0], [0]>} : vector<2x16x16xbf16>, vector<2x16x8xbf16>, vector<2x16x8xf32> -> vector<2x16x8xf32>
    "tpu.trace_stop"() : () -> ()
    %120 = vector.shape_cast %119 : vector<2x16x8xf32> to vector<32x8xf32>
    %121 = arith.truncf %120 : vector<32x8xf32> to vector<32x8xbf16>
    %122 = vector.extract_strided_slice %7 {offsets = [24, 0], sizes = [8, 32], strides = [1, 1]} : vector<32x32xbf16> to vector<8x32xbf16>
    %cst_31 = arith.constant dense<0.000000e+00> : vector<32x32xf32>
    %123 = tpu.matmul %121, %122, %cst_31 {dimension_numbers = #tpu.dot_dimension_numbers<[1], [0], [0], [1], [0, 0, 1, 1], [], []>} : vector<32x8xbf16>, vector<8x32xbf16>, vector<32x32xf32> -> vector<32x32xf32>
    %124 = arith.addf %95, %123 : vector<32x32xf32>
    %c0_32 = arith.constant 0 : index
    %c0_33 = arith.constant 0 : index
    %125 = vector.load %arg4[%c0_32, %c0_33] : memref<1x32xf32, #tpu.memory_space<vmem>>, vector<1x32xf32>
    %126 = vector.broadcast %125 : vector<1x32xf32> to vector<32x32xf32>
    %127 = arith.addf %124, %126 : vector<32x32xf32>
    %128 = arith.addf %127, %0 : vector<32x32xf32>
    %c0_34 = arith.constant 0 : index
    %c0_35 = arith.constant 0 : index
    %129 = vector.load %arg5[%c0_34, %c0_35] : memref<1x32xf32, #tpu.memory_space<vmem>>, vector<1x32xf32>
    %c0_36 = arith.constant 0 : index
    %c0_37 = arith.constant 0 : index
    %130 = vector.load %arg6[%c0_36, %c0_37] : memref<1x32xf32, #tpu.memory_space<vmem>>, vector<1x32xf32>
    %cst_38 = arith.constant dense<0.000000e+00> : vector<32xf32>
    %131 = vector.multi_reduction <add>, %128, %cst_38 [1] : vector<32x32xf32> to vector<32xf32>
    %132 = vector.shape_cast %131 : vector<32xf32> to vector<32x1xf32>
    %cst_39 = arith.constant 3.200000e+01 : f32
    %133 = vector.broadcast %cst_39 : f32 to vector<32x1xf32>
    %134 = arith.divf %132, %133 : vector<32x1xf32>
    %135 = vector.broadcast %134 : vector<32x1xf32> to vector<32x32xf32>
    %136 = arith.subf %128, %135 : vector<32x32xf32>
    %137 = arith.mulf %136, %136 : vector<32x32xf32>
    %cst_40 = arith.constant dense<0.000000e+00> : vector<32xf32>
    %138 = vector.multi_reduction <add>, %137, %cst_40 [1] : vector<32x32xf32> to vector<32xf32>
    %139 = vector.shape_cast %138 : vector<32xf32> to vector<32x1xf32>
    %cst_41 = arith.constant 3.200000e+01 : f32
    %140 = vector.broadcast %cst_41 : f32 to vector<32x1xf32>
    %141 = arith.divf %139, %140 : vector<32x1xf32>
    %142 = vector.broadcast %134 : vector<32x1xf32> to vector<32x32xf32>
    %143 = arith.subf %128, %142 : vector<32x32xf32>
    %cst_42 = arith.constant 9.99999974E-6 : f32
    %144 = vector.broadcast %cst_42 : f32 to vector<32x1xf32>
    %145 = arith.addf %141, %144 : vector<32x1xf32>
    %146 = math.rsqrt %145 : vector<32x1xf32>
    %147 = vector.broadcast %146 : vector<32x1xf32> to vector<32x32xf32>
    %148 = arith.mulf %143, %147 : vector<32x32xf32>
    %149 = vector.broadcast %129 : vector<1x32xf32> to vector<32x32xf32>
    %150 = arith.mulf %148, %149 : vector<32x32xf32>
    %151 = vector.broadcast %130 : vector<1x32xf32> to vector<32x32xf32>
    %152 = arith.addf %150, %151 : vector<32x32xf32>
    %c0_43 = arith.constant 0 : index
    %c0_44 = arith.constant 0 : index
    %153 = vector.load %arg7[%c0_43, %c0_44] : memref<32x32xf32, #tpu.memory_space<vmem>>, vector<32x32xf32>
    tpu.vector_store %arg7[%c0_43, %c0_44], %152 {strides = array<i32>} : memref<32x32xf32, #tpu.memory_space<vmem>>, vector<32x32xf32>,
    return
  }
}

module attributes {stable_mosaic.version = 11 : i64} {
  func.func @_tail_kernel(%arg0: memref<2x32x16xf32, #tpu.memory_space<vmem>>, %arg1: memref<32x32xbf16, #tpu.memory_space<vmem>>, %arg2: memref<1x32xf32, #tpu.memory_space<vmem>>, %arg3: memref<32x3xbf16, #tpu.memory_space<vmem>>, %arg4: memref<1x3xf32, #tpu.memory_space<vmem>>, %arg5: memref<2x3xf32, #tpu.memory_space<vmem>>) attributes {dimension_semantics = [], scalar_prefetch = 0 : i64, scratch_operands = 0 : i64, tpu.core_type = #tpu.core_type<tc>} {
    %c0 = arith.constant 0 : index
    %c0_0 = arith.constant 0 : index
    %c0_1 = arith.constant 0 : index
    %0 = vector.load %arg0[%c0, %c0_0, %c0_1] : memref<2x32x16xf32, #tpu.memory_space<vmem>>, vector<2x32x16xf32>
    %cst = arith.constant dense<0xFF800000> : vector<2x32xf32>
    %1 = vector.multi_reduction <maximumf>, %0, %cst [2] : vector<2x32x16xf32> to vector<2x32xf32>
    %cst_2 = arith.constant 0.000000e+00 : f32
    %2 = vector.broadcast %cst_2 : f32 to vector<2x32xf32>
    %3 = arith.maximumf %1, %2 : vector<2x32xf32>
    %4 = arith.truncf %3 : vector<2x32xf32> to vector<2x32xbf16>
    %c0_3 = arith.constant 0 : index
    %c0_4 = arith.constant 0 : index
    %5 = vector.load %arg1[%c0_3, %c0_4] : memref<32x32xbf16, #tpu.memory_space<vmem>>, vector<32x32xbf16>
    %cst_5 = arith.constant dense<0.000000e+00> : vector<2x32xf32>
    %6 = tpu.matmul %4, %5, %cst_5 {dimension_numbers = #tpu.dot_dimension_numbers<[1], [0], [0], [1], [0, 0, 1, 1], [], []>} : vector<2x32xbf16>, vector<32x32xbf16>, vector<2x32xf32> -> vector<2x32xf32>
    %c0_6 = arith.constant 0 : index
    %c0_7 = arith.constant 0 : index
    %7 = vector.load %arg2[%c0_6, %c0_7] : memref<1x32xf32, #tpu.memory_space<vmem>>, vector<1x32xf32>
    %8 = vector.broadcast %7 : vector<1x32xf32> to vector<2x32xf32>
    %9 = arith.addf %6, %8 : vector<2x32xf32>
    %10 = arith.truncf %9 : vector<2x32xf32> to vector<2x32xbf16>
    %c0_8 = arith.constant 0 : index
    %c0_9 = arith.constant 0 : index
    %11 = vector.load %arg3[%c0_8, %c0_9] : memref<32x3xbf16, #tpu.memory_space<vmem>>, vector<32x3xbf16>
    %cst_10 = arith.constant dense<0.000000e+00> : vector<2x3xf32>
    %12 = tpu.matmul %10, %11, %cst_10 {dimension_numbers = #tpu.dot_dimension_numbers<[1], [0], [0], [1], [0, 0, 1, 1], [], []>} : vector<2x32xbf16>, vector<32x3xbf16>, vector<2x3xf32> -> vector<2x3xf32>
    %c0_11 = arith.constant 0 : index
    %c0_12 = arith.constant 0 : index
    %13 = vector.load %arg4[%c0_11, %c0_12] : memref<1x3xf32, #tpu.memory_space<vmem>>, vector<1x3xf32>
    %14 = vector.broadcast %13 : vector<1x3xf32> to vector<2x3xf32>
    %15 = arith.addf %12, %14 : vector<2x3xf32>
    %c0_13 = arith.constant 0 : index
    %c0_14 = arith.constant 0 : index
    %16 = vector.load %arg5[%c0_13, %c0_14] : memref<2x3xf32, #tpu.memory_space<vmem>>, vector<2x3xf32>
    tpu.vector_store %arg5[%c0_13, %c0_14], %15 {strides = array<i32>} : memref<2x3xf32, #tpu.memory_space<vmem>>, vector<2x3xf32>,
    return
  }
}

</mosaic_0001>

<llo_original>
// kernel: fomc_forward.4
$region0: #{fomc_forward.4}
  #allocation0 [shape = 'u32[]', space=smem, size = 0x4, offset = 0x4, fixed_abs, tag = 'smem constant byte address 0x4 - core index']
  #allocation1 [shape = 'u32[72,128]{1,0:T(1,128)}', space=vmem, size = 0x9000, scoped, tag = 'internal scratch']
  %s0 = inlined_call_operand.vmem [shape: f32[32,768], index: 0, kind: input, shape index: {}]
  %s1 = inlined_call_operand.vmem [shape: bf16[768,32], index: 1, kind: input, shape index: {}]
  %s2 = inlined_call_operand.vmem [shape: f32[1,32], index: 2, kind: input, shape index: {}]
  %s3 = inlined_call_operand.vmem [shape: f32[1,32], index: 3, kind: input, shape index: {}]
  %s4 = inlined_call_operand.vmem [shape: f32[1,32], index: 4, kind: input, shape index: {}]
  %s5 = inlined_call_operand.vmem [shape: f32[32,32], index: 5, kind: output, shape index: {}]
  %s6 = sld [smem:[#allocation0]]
  $region30: #{fomc_forward.4} parent=0
    _
  %s8 = ssub.s32 1, %s6
  %s9 = scalar_select 0, %s8, %s6
  // Predicated region
  $region2: #{fomc_forward.4} parent=0 // pred_check
    _
  $region3: #{fomc_forward.4} parent=0 // pred_check_branch
    %11 = sbr.rel (0) target = $region5
  $region4: #{fomc_forward.4} parent=0 // pred_region
    _
  $region5: #{fomc_forward.4} parent=0 // pred_fallthru
    _
  // Predicated region
  $region6: #{fomc_forward.4} parent=0 // pred_check
    _
  $region7: #{fomc_forward.4} parent=0 // pred_check_branch
    %13 = sbr.rel (0) target = $region9
  $region8: #{fomc_forward.4} parent=0 // pred_region
    _
  $region9: #{fomc_forward.4} parent=0 // pred_fallthru
    _
  // Predicated region
  $region10: #{fomc_forward.4} parent=0 // pred_check
    _
  $region11: #{fomc_forward.4} parent=0 // pred_check_branch
    %15 = sbr.rel (0) target = $region13
  $region12: #{fomc_forward.4} parent=0 // pred_region
    _
  $region13: #{fomc_forward.4} parent=0 // pred_fallthru
    _
  // Predicated region
  $region14: #{fomc_forward.4} parent=0 // pred_check
    _
  $region15: #{fomc_forward.4} parent=0 // pred_check_branch
    %17 = sbr.rel (0) target = $region17
  $region16: #{fomc_forward.4} parent=0 // pred_region
    _
  $region17: #{fomc_forward.4} parent=0 // pred_fallthru
    _
  // Predicated region
  $region18: #{fomc_forward.4} parent=0 // pred_check
    _
  $region19: #{fomc_forward.4} parent=0 // pred_check_branch
    %19 = sbr.rel (0) target = $region21
  $region20: #{fomc_forward.4} parent=0 // pred_region
    _
  $region21: #{fomc_forward.4} parent=0 // pred_fallthru
    _
  %v20 = vld [vmem:[%s0] sm:$0xff]
  %v21 = vld [vmem:[%s0 + $0x8] sm:$0xff]
  %v22 = vld [vmem:[%s0 + $0x10] sm:$0xff]
  %v23 = vld [vmem:[%s0 + $0x18] sm:$0xff]
  %v24 = vld [vmem:[%s0 + $0x20] sm:$0xff]
  %v25 = vld [vmem:[%s0 + $0x28] sm:$0xff]
  %v26 = vld [vmem:[%s0 + $0x30] sm:$0xff]
  %v27 = vld [vmem:[%s0 + $0x38] sm:$0xff]
  %v28 = vld [vmem:[%s0 + $0x40] sm:$0xff]
  %v29 = vld [vmem:[%s0 + $0x48] sm:$0xff]
  %v30 = vld [vmem:[%s0 + $0x50] sm:$0xff]
  %v31 = vld [vmem:[%s0 + $0x58] sm:$0xff]
  %v32 = vld [vmem:[%s0 + $0x60] sm:$0xff]
  %v33 = vld [vmem:[%s0 + $0x68] sm:$0xff]
  %v34 = vld [vmem:[%s0 + $0x70] sm:$0xff]
  %v35 = vld [vmem:[%s0 + $0x78] sm:$0xff]
  %v36 = vld [vmem:[%s0 + $0x80] sm:$0xff]
  %v37 = vld [vmem:[%s0 + $0x88] sm:$0xff]
  %v38 = vld [vmem:[%s0 + $0x90] sm:$0xff]
  %v39 = vld [vmem:[%s0 + $0x98] sm:$0xff]
  %v40 = vld [vmem:[%s0 + $0xa0] sm:$0xff]
  %v41 = vld [vmem:[%s0 + $0xa8] sm:$0xff]
  %v42 = vld [vmem:[%s0 + $0xb0] sm:$0xff]
  %v43 = vld [vmem:[%s0 + $0xb8] sm:$0xff]
  %v44 = vpack.c.bf16 %v26, %v20
  %v45 = vpack.c.bf16 %v27, %v21
  %v46 = vpack.c.bf16 %v28, %v22
  %v47 = vpack.c.bf16 %v29, %v23
  %v48 = vpack.c.bf16 %v30, %v24
  %v49 = vpack.c.bf16 %v31, %v25
  %v50 = vpack.c.bf16 %v38, %v32
  %v51 = vpack.c.bf16 %v39, %v33
  %v52 = vpack.c.bf16 %v40, %v34
  %v53 = vpack.c.bf16 %v41, %v35
  %v54 = vpack.c.bf16 %v42, %v36
  %v55 = vpack.c.bf16 %v43, %v37
  %v56 = vld [vmem:[%s1] sm:$0xf]
  %v57 = vld [vmem:[%s1 + $0x4] sm:$0xf]
  %v58 = vld [vmem:[%s1 + $0x8] sm:$0xf]
  %v59 = vld [vmem:[%s1 + $0xc] sm:$0xf]
  %v60 = vld [vmem:[%s1 + $0x10] sm:$0xf]
  %v61 = vld [vmem:[%s1 + $0x14] sm:$0xf]
  %v62 = vld [vmem:[%s1 + $0x18] sm:$0xf]
  %v63 = vld [vmem:[%s1 + $0x1c] sm:$0xf]
  %v64 = vld [vmem:[%s1 + $0x20] sm:$0xf]
  %v65 = vld [vmem:[%s1 + $0x24] sm:$0xf]
  %v66 = vld [vmem:[%s1 + $0x28] sm:$0xf]
  %v67 = vld [vmem:[%s1 + $0x2c] sm:$0xf]
  %v68 = vld [vmem:[%s1 + $0x30] sm:$0xf]
  %v69 = vld [vmem:[%s1 + $0x34] sm:$0xf]
  %v70 = vld [vmem:[%s1 + $0x38] sm:$0xf]
  %v71 = vld [vmem:[%s1 + $0x3c] sm:$0xf]
  %v72 = vld [vmem:[%s1 + $0x40] sm:$0xf]
  %v73 = vld [vmem:[%s1 + $0x44] sm:$0xf]
  %v74 = vld [vmem:[%s1 + $0x48] sm:$0xf]
  %v75 = vld [vmem:[%s1 + $0x4c] sm:$0xf]
  %v76 = vld [vmem:[%s1 + $0x50] sm:$0xf]
  %v77 = vld [vmem:[%s1 + $0x54] sm:$0xf]
  %v78 = vld [vmem:[%s1 + $0x58] sm:$0xf]
  %v79 = vld [vmem:[%s1 + $0x5c] sm:$0xf]
  %v80 = vld [vmem:[%s1 + $0x60] sm:$0xf]
  %v81 = vld [vmem:[%s1 + $0x64] sm:$0xf]
  %v82 = vld [vmem:[%s1 + $0x68] sm:$0xf]
  %v83 = vld [vmem:[%s1 + $0x6c] sm:$0xf]
  %v84 = vld [vmem:[%s1 + $0x70] sm:$0xf]
  %v85 = vld [vmem:[%s1 + $0x74] sm:$0xf]
  %v86 = vld [vmem:[%s1 + $0x78] sm:$0xf]
  %v87 = vld [vmem:[%s1 + $0x7c] sm:$0xf]
  %v88 = vld [vmem:[%s1 + $0x80] sm:$0xf]
  %v89 = vld [vmem:[%s1 + $0x84] sm:$0xf]
  %v90 = vld [vmem:[%s1 + $0x88] sm:$0xf]
  %v91 = vld [vmem:[%s1 + $0x8c] sm:$0xf]
  %v92 = vld [vmem:[%s1 + $0x90] sm:$0xf]
  %v93 = vld [vmem:[%s1 + $0x94] sm:$0xf]
  %v94 = vld [vmem:[%s1 + $0x98] sm:$0xf]
  %v95 = vld [vmem:[%s1 + $0x9c] sm:$0xf]
  %v96 = vld [vmem:[%s1 + $0xa0] sm:$0xf]
  %v97 = vld [vmem:[%s1 + $0xa4] sm:$0xf]
  %v98 = vld [vmem:[%s1 + $0xa8] sm:$0xf]
  %v99 = vld [vmem:[%s1 + $0xac] sm:$0xf]
  %v100 = vld [vmem:[%s1 + $0xb0] sm:$0xf]
  %v101 = vld [vmem:[%s1 + $0xb4] sm:$0xf]
  %v102 = vld [vmem:[%s1 + $0xb8] sm:$0xf]
  %v103 = vld [vmem:[%s1 + $0xbc] sm:$0xf]
  %v104 = vld [vmem:[%s1 + $0xc0] sm:$0xf]
  %v105 = vld [vmem:[%s1 + $0xc4] sm:$0xf]
  %v106 = vld [vmem:[%s1 + $0xc8] sm:$0xf]
  %v107 = vld [vmem:[%s1 + $0xcc] sm:$0xf]
  %v108 = vld [vmem:[%s1 + $0xd0] sm:$0xf]
  %v109 = vld [vmem:[%s1 + $0xd4] sm:$0xf]
  %v110 = vld [vmem:[%s1 + $0xd8] sm:$0xf]
  %v111 = vld [vmem:[%s1 + $0xdc] sm:$0xf]
  %v112 = vld [vmem:[%s1 + $0xe0] sm:$0xf]
  %v113 = vld [vmem:[%s1 + $0xe4] sm:$0xf]
  %v114 = vld [vmem:[%s1 + $0xe8] sm:$0xf]
  %v115 = vld [vmem:[%s1 + $0xec] sm:$0xf]
  %v116 = vld [vmem:[%s1 + $0xf0] sm:$0xf]
  %v117 = vld [vmem:[%s1 + $0xf4] sm:$0xf]
  %v118 = vld [vmem:[%s1 + $0xf8] sm:$0xf]
  %v119 = vld [vmem:[%s1 + $0xfc] sm:$0xf]
  %v120 = vld [vmem:[%s1 + $0x100] sm:$0xf]
  %v121 = vld [vmem:[%s1 + $0x104] sm:$0xf]
  %v122 = vld [vmem:[%s1 + $0x108] sm:$0xf]
  %v123 = vld [vmem:[%s1 + $0x10c] sm:$0xf]
  %v124 = vld [vmem:[%s1 + $0x110] sm:$0xf]
  %v125 = vld [vmem:[%s1 + $0x114] sm:$0xf]
  %v126 = vld [vmem:[%s1 + $0x118] sm:$0xf]
  %v127 = vld [vmem:[%s1 + $0x11c] sm:$0xf]
  %v128 = vld [vmem:[%s1 + $0x120] sm:$0xf]
  %v129 = vld [vmem:[%s1 + $0x124] sm:$0xf]
  %v130 = vld [vmem:[%s1 + $0x128] sm:$0xf]
  %v131 = vld [vmem:[%s1 + $0x12c] sm:$0xf]
  %v132 = vld [vmem:[%s1 + $0x130] sm:$0xf]
  %v133 = vld [vmem:[%s1 + $0x134] sm:$0xf]
  %v134 = vld [vmem:[%s1 + $0x138] sm:$0xf]
  %v135 = vld [vmem:[%s1 + $0x13c] sm:$0xf]
  %v136 = vld [vmem:[%s1 + $0x140] sm:$0xf]
  %v137 = vld [vmem:[%s1 + $0x144] sm:$0xf]
  %v138 = vld [vmem:[%s1 + $0x148] sm:$0xf]
  %v139 = vld [vmem:[%s1 + $0x14c] sm:$0xf]
  %v140 = vld [vmem:[%s1 + $0x150] sm:$0xf]
  %v141 = vld [vmem:[%s1 + $0x154] sm:$0xf]
  %v142 = vld [vmem:[%s1 + $0x158] sm:$0xf]
  %v143 = vld [vmem:[%s1 + $0x15c] sm:$0xf]
  %v144 = vld [vmem:[%s1 + $0x160] sm:$0xf]
  %v145 = vld [vmem:[%s1 + $0x164] sm:$0xf]
  %v146 = vld [vmem:[%s1 + $0x168] sm:$0xf]
  %v147 = vld [vmem:[%s1 + $0x16c] sm:$0xf]
  %v148 = vld [vmem:[%s1 + $0x170] sm:$0xf]
  %v149 = vld [vmem:[%s1 + $0x174] sm:$0xf]
  %v150 = vld [vmem:[%s1 + $0x178] sm:$0xf]
  %v151 = vld [vmem:[%s1 + $0x17c] sm:$0xf]
  %v152 = vld [vmem:[%s2] sm:$0x1]
  %v154 = vperm.slane %v152, 0
  %v252 = vunpack.c.l.b16 %v56
  %v253 = vunpack.c.l.b16 %v57
  %v254 = vunpack.c.l.b16 %v58
  %v255 = vunpack.c.l.b16 %v59
  %v256 = vunpack.c.l.b16 %v60
  %v257 = vunpack.c.l.b16 %v61
  %v258 = vunpack.c.l.b16 %v62
  %v259 = vunpack.c.l.b16 %v63
  %v260 = vunpack.c.l.b16 %v64
  %v261 = vunpack.c.l.b16 %v65
  %v262 = vunpack.c.l.b16 %v66
  %v263 = vunpack.c.l.b16 %v67
  %v264 = vunpack.c.l.b16 %v68
  %v265 = vunpack.c.l.b16 %v69
  %v266 = vunpack.c.l.b16 %v70
  %v267 = vunpack.c.l.b16 %v71
  %v268 = vunpack.c.l.b16 %v72
  %v269 = vunpack.c.l.b16 %v73
  %v270 = vunpack.c.l.b16 %v74
  %v271 = vunpack.c.l.b16 %v75
  %v272 = vunpack.c.l.b16 %v76
  %v273 = vunpack.c.l.b16 %v77
  %v274 = vunpack.c.l.b16 %v78
  %v275 = vunpack.c.l.b16 %v79
  %v276 = vunpack.c.l.b16 %v80
  %v277 = vunpack.c.l.b16 %v81
  %v278 = vunpack.c.l.b16 %v82
  %v279 = vunpack.c.l.b16 %v83
  %v280 = vunpack.c.l.b16 %v84
  %v281 = vunpack.c.l.b16 %v85
  %v282 = vunpack.c.l.b16 %v86
  %v283 = vunpack.c.l.b16 %v87
  %v284 = vunpack.c.l.b16 %v88
  %v285 = vunpack.c.l.b16 %v89
  %v286 = vunpack.c.l.b16 %v90
  %v287 = vunpack.c.l.b16 %v91
  %v288 = vunpack.c.l.b16 %v92
  %v289 = vunpack.c.l.b16 %v93
  %v290 = vunpack.c.l.b16 %v94
  %v291 = vunpack.c.l.b16 %v95
  %v292 = vunpack.c.l.b16 %v96
  %v293 = vunpack.c.l.b16 %v97
  %v294 = vunpack.c.l.b16 %v98
  %v295 = vunpack.c.l.b16 %v99
  %v296 = vunpack.c.l.b16 %v100
  %v297 = vunpack.c.l.b16 %v101
  %v298 = vunpack.c.l.b16 %v102
  %v299 = vunpack.c.l.b16 %v103
  %v300 = vunpack.c.l.b16 %v104
  %v301 = vunpack.c.l.b16 %v105
  %v302 = vunpack.c.l.b16 %v106
  %v303 = vunpack.c.l.b16 %v107
  %v304 = vunpack.c.l.b16 %v108
  %v305 = vunpack.c.l.b16 %v109
  %v306 = vunpack.c.l.b16 %v110
  %v307 = vunpack.c.l.b16 %v111
  %v308 = vunpack.c.l.b16 %v112
  %v309 = vunpack.c.l.b16 %v113
  %v310 = vunpack.c.l.b16 %v114
  %v311 = vunpack.c.l.b16 %v115
  %v312 = vunpack.c.l.b16 %v116
  %v313 = vunpack.c.l.b16 %v117
  %v314 = vunpack.c.l.b16 %v118
  %v315 = vunpack.c.l.b16 %v119
  %v316 = vunpack.c.l.b16 %v120
  %v317 = vunpack.c.l.b16 %v121
  %v318 = vunpack.c.l.b16 %v122
  %v319 = vunpack.c.l.b16 %v123
  %v320 = vunpack.c.l.b16 %v124
  %v321 = vunpack.c.l.b16 %v125
  %v322 = vunpack.c.l.b16 %v126
  %v323 = vunpack.c.l.b16 %v127
  %v324 = vunpack.c.l.b16 %v128
  %v325 = vunpack.c.l.b16 %v129
  %v326 = vunpack.c.l.b16 %v130
  %v327 = vunpack.c.l.b16 %v131
  %v328 = vunpack.c.l.b16 %v132
  %v329 = vunpack.c.l.b16 %v133
  %v330 = vunpack.c.l.b16 %v134
  %v331 = vunpack.c.l.b16 %v135
  %v332 = vunpack.c.l.b16 %v136
  %v333 = vunpack.c.l.b16 %v137
  %v334 = vunpack.c.l.b16 %v138
  %v335 = vunpack.c.l.b16 %v139
  %v336 = vunpack.c.l.b16 %v140
  %v337 = vunpack.c.l.b16 %v141
  %v338 = vunpack.c.l.b16 %v142
  %v339 = vunpack.c.l.b16 %v143
  %v340 = vunpack.c.l.b16 %v144
  %v341 = vunpack.c.l.b16 %v145
  %v342 = vunpack.c.l.b16 %v146
  %v343 = vunpack.c.l.b16 %v147
  %v344 = vunpack.c.l.b16 %v148
  %v345 = vunpack.c.l.b16 %v149
  %v346 = vunpack.c.l.b16 %v150
  %v347 = vunpack.c.l.b16 %v151
  %v348 = vpack.c.b16 %v253, %v252
  %v349 = vpack.c.b16 %v255, %v254
  %v350 = vpack.c.b16 %v257, %v256
  %v351 = vpack.c.b16 %v259, %v258
  %v352 = vpack.c.b16 %v261, %v260
  %v353 = vpack.c.b16 %v263, %v262
  %v354 = vpack.c.b16 %v265, %v264
  %v355 = vpack.c.b16 %v267, %v266
  %v356 = vpack.c.b16 %v269, %v268
  %v357 = vpack.c.b16 %v271, %v270
  %v358 = vpack.c.b16 %v273, %v272
  %v359 = vpack.c.b16 %v275, %v274
  %v360 = vpack.c.b16 %v277, %v276
  %v361 = vpack.c.b16 %v279, %v278
  %v362 = vpack.c.b16 %v281, %v280
  %v363 = vpack.c.b16 %v283, %v282
  %v364 = vpack.c.b16 %v285, %v284
  %v365 = vpack.c.b16 %v287, %v286
  %v366 = vpack.c.b16 %v289, %v288
  %v367 = vpack.c.b16 %v291, %v290
  %v368 = vpack.c.b16 %v293, %v292
  %v369 = vpack.c.b16 %v295, %v294
  %v370 = vpack.c.b16 %v297, %v296
  %v371 = vpack.c.b16 %v299, %v298
  %v372 = vpack.c.b16 %v301, %v300
  %v373 = vpack.c.b16 %v303, %v302
  %v374 = vpack.c.b16 %v305, %v304
  %v375 = vpack.c.b16 %v307, %v306
  %v376 = vpack.c.b16 %v309, %v308
  %v377 = vpack.c.b16 %v311, %v310
  %v378 = vpack.c.b16 %v313, %v312
  %v379 = vpack.c.b16 %v315, %v314
  %v380 = vpack.c.b16 %v317, %v316
  %v381 = vpack.c.b16 %v319, %v318
  %v382 = vpack.c.b16 %v321, %v320
  %v383 = vpack.c.b16 %v323, %v322
  %v384 = vpack.c.b16 %v325, %v324
  %v385 = vpack.c.b16 %v327, %v326
  %v386 = vpack.c.b16 %v329, %v328
  %v387 = vpack.c.b16 %v331, %v330
  %v388 = vpack.c.b16 %v333, %v332
  %v389 = vpack.c.b16 %v335, %v334
  %v390 = vpack.c.b16 %v337, %v336
  %v391 = vpack.c.b16 %v339, %v338
  %v392 = vpack.c.b16 %v341, %v340
  %v393 = vpack.c.b16 %v343, %v342
  %v394 = vpack.c.b16 %v345, %v344
  %v395 = vpack.c.b16 %v347, %v346
  %444 = vmatpush.bf16.msra.mxu0 %v355
  %445 = vmatpush.bf16.msra.mxu0 %v354
  %446 = vmatpush.bf16.msra.mxu0 %v353
  %447 = vmatpush.bf16.msra.mxu0 %v352
  %448 = vmatpush.bf16.msra.mxu0 %v351
  %449 = vmatpush.bf16.msra.mxu0 %v350
  %450 = vmatpush.bf16.msra.mxu0 %v349
  %451 = vmatpush.bf16.msra.mxu0 %v348
  %452 = vmatmul.bf16.gmra.mxu0 %v44
  %v453 = vpop.f32.mrf.mxu0
  %v454 = vadd.f32 %v154, %v453
  %v455 = vpop.f32.mrf.mxu0
  %v456 = vadd.f32 %v154, %v455
  %457 = vmatmul.bf16.gmra.mxu0 %v50
  %v458 = vpop.f32.mrf.mxu0
  %v459 = vadd.f32 %v154, %v458
  %v460 = vpop.f32.mrf.mxu0
  %v461 = vadd.f32 %v154, %v460
  %462 = vdwg.mxu0
  %463 = vmatpush.bf16.msra.mxu0 %v363
  %464 = vmatpush.bf16.msra.mxu0 %v362
  %465 = vmatpush.bf16.msra.mxu0 %v361
  %466 = vmatpush.bf16.msra.mxu0 %v360
  %467 = vmatpush.bf16.msra.mxu0 %v359
  %468 = vmatpush.bf16.msra.mxu0 %v358
  %469 = vmatpush.bf16.msra.mxu0 %v357
  %470 = vmatpush.bf16.msra.mxu0 %v356
  %471 = vmatmul.bf16.gmra.mxu0 %v45
  %v472 = vpop.f32.mrf.mxu0
  %v473 = vadd.f32 %v454, %v472
  %v474 = vpop.f32.mrf.mxu0
  %v475 = vadd.f32 %v456, %v474
  %476 = vmatmul.bf16.gmra.mxu0 %v51
  %v477 = vpop.f32.mrf.mxu0
  %v478 = vadd.f32 %v459, %v477
  %v479 = vpop.f32.mrf.mxu0
  %v480 = vadd.f32 %v461, %v479
  %481 = vdwg.mxu0
  %482 = vmatpush.bf16.msra.mxu0 %v371
  %483 = vmatpush.bf16.msra.mxu0 %v370
  %484 = vmatpush.bf16.msra.mxu0 %v369
  %485 = vmatpush.bf16.msra.mxu0 %v368
  %486 = vmatpush.bf16.msra.mxu0 %v367
  %487 = vmatpush.bf16.msra.mxu0 %v366
  %488 = vmatpush.bf16.msra.mxu0 %v365
  %489 = vmatpush.bf16.msra.mxu0 %v364
  %490 = vmatmul.bf16.gmra.mxu0 %v46
  %v491 = vpop.f32.mrf.mxu0
  %v492 = vadd.f32 %v473, %v491
  %v493 = vpop.f32.mrf.mxu0
  %v494 = vadd.f32 %v475, %v493
  %495 = vmatmul.bf16.gmra.mxu0 %v52
  %v496 = vpop.f32.mrf.mxu0
  %v497 = vadd.f32 %v478, %v496
  %v498 = vpop.f32.mrf.mxu0
  %v499 = vadd.f32 %v480, %v498
  %500 = vdwg.mxu0
  %501 = vmatpush.bf16.msra.mxu0 %v379
  %502 = vmatpush.bf16.msra.mxu0 %v378
  %503 = vmatpush.bf16.msra.mxu0 %v377
  %504 = vmatpush.bf16.msra.mxu0 %v376
  %505 = vmatpush.bf16.msra.mxu0 %v375
  %506 = vmatpush.bf16.msra.mxu0 %v374
  %507 = vmatpush.bf16.msra.mxu0 %v373
  %508 = vmatpush.bf16.msra.mxu0 %v372
  %509 = vmatmul.bf16.gmra.mxu0 %v47
  %v510 = vpop.f32.mrf.mxu0
  %v511 = vadd.f32 %v492, %v510
  %v512 = vpop.f32.mrf.mxu0
  %v513 = vadd.f32 %v494, %v512
  %514 = vmatmul.bf16.gmra.mxu0 %v53
  %v515 = vpop.f32.mrf.mxu0
  %v516 = vadd.f32 %v497, %v515
  %v517 = vpop.f32.mrf.mxu0
  %v518 = vadd.f32 %v499, %v517
  %519 = vdwg.mxu0
  %520 = vmatpush.bf16.msra.mxu0 %v387
  %521 = vmatpush.bf16.msra.mxu0 %v386
  %522 = vmatpush.bf16.msra.mxu0 %v385
  %523 = vmatpush.bf16.msra.mxu0 %v384
  %524 = vmatpush.bf16.msra.mxu0 %v383
  %525 = vmatpush.bf16.msra.mxu0 %v382
  %526 = vmatpush.bf16.msra.mxu0 %v381
  %527 = vmatpush.bf16.msra.mxu0 %v380
  %528 = vmatmul.bf16.gmra.mxu0 %v48
  %v529 = vpop.f32.mrf.mxu0
  %v530 = vadd.f32 %v511, %v529
  %v531 = vpop.f32.mrf.mxu0
  %v532 = vadd.f32 %v513, %v531
  %533 = vmatmul.bf16.gmra.mxu0 %v54
  %v534 = vpop.f32.mrf.mxu0
  %v535 = vadd.f32 %v516, %v534
  %v536 = vpop.f32.mrf.mxu0
  %v537 = vadd.f32 %v518, %v536
  %538 = vdwg.mxu0
  %539 = vmatpush.bf16.msra.mxu0 %v395
  %540 = vmatpush.bf16.msra.mxu0 %v394
  %541 = vmatpush.bf16.msra.mxu0 %v393
  %542 = vmatpush.bf16.msra.mxu0 %v392
  %543 = vmatpush.bf16.msra.mxu0 %v391
  %544 = vmatpush.bf16.msra.mxu0 %v390
  %545 = vmatpush.bf16.msra.mxu0 %v389
  %546 = vmatpush.bf16.msra.mxu0 %v388
  %547 = vmatmul.bf16.gmra.mxu0 %v49
  %v548 = vpop.f32.mrf.mxu0
  %v549 = vadd.f32 %v530, %v548
  %v550 = vpop.f32.mrf.mxu0
  %v551 = vadd.f32 %v532, %v550
  %552 = vmatmul.bf16.gmra.mxu0 %v55
  %v553 = vpop.f32.mrf.mxu0
  %v554 = vadd.f32 %v535, %v553
  %v555 = vpop.f32.mrf.mxu0
  %v556 = vadd.f32 %v537, %v555
  %557 = vdwg.mxu0
  %v558 = vld [vmem:[%s3] sm:$0x1]
  %v559 = vld [vmem:[%s4] sm:$0x1]
  %vm560 = vcmask 261120
  %v561 = vsel %vm560, %v549, 0.0
  %562 = vadd.xlane.f32.xlu0 %v561
  %v563 = vpop.xlane.xlu0 %562
  %v564 = vsel %vm560, %v551, 0.0
  %565 = vadd.xlane.f32.xlu0 %v564
  %v566 = vpop.xlane.xlu0 %565
  %v567 = vsel %vm560, %v554, 0.0
  %568 = vadd.xlane.f32.xlu0 %v567
  %v569 = vpop.xlane.xlu0 %568
  %v570 = vsel %vm560, %v556, 0.0
  %571 = vadd.xlane.f32.xlu0 %v570
  %v572 = vpop.xlane.xlu0 %571
  %v573 = vrcp.pop 32.0
  %v574 = vmul.f32 32.0, %v573
  %v575 = vsub.f32 1.0, %v574
  %v576 = vmul.f32 %v573, %v575
  %v577 = vadd.f32 %v573, %v576
  %vm578 = vweird.f32 %v573
  %v579 = vsel %vm578, %v573, %v577
  %v580 = vmul.f32 %v563, %v579
  %v581 = vmul.f32 %v566, %v579
  %v582 = vmul.f32 %v569, %v579
  %v583 = vmul.f32 %v572, %v579
  %v584 = vsub.f32 %v549, %v580
  %v585 = vsub.f32 %v551, %v581
  %v586 = vsub.f32 %v554, %v582
  %v587 = vsub.f32 %v556, %v583
  %v588 = vmul.f32 %v584, %v584
  %v589 = vmul.f32 %v585, %v585
  %v590 = vmul.f32 %v586, %v586
  %v591 = vmul.f32 %v587, %v587
  %v592 = vsel %vm560, %v588, 0.0
  %593 = vadd.xlane.f32.xlu0 %v592
  %v594 = vpop.xlane.xlu0 %593
  %v595 = vsel %vm560, %v589, 0.0
  %596 = vadd.xlane.f32.xlu0 %v595
  %v597 = vpop.xlane.xlu0 %596
  %v598 = vsel %vm560, %v590, 0.0
  %599 = vadd.xlane.f32.xlu0 %v598
  %v600 = vpop.xlane.xlu0 %599
  %v601 = vsel %vm560, %v591, 0.0
  %602 = vadd.xlane.f32.xlu0 %v601
  %v603 = vpop.xlane.xlu0 %602
  %v604 = vmul.f32 %v594, %v579
  %v605 = vmul.f32 %v597, %v579
  %v606 = vmul.f32 %v600, %v579
  %v607 = vmul.f32 %v603, %v579
  %v608 = vadd.f32 %v604, 1e-05
  %v609 = vadd.f32 %v605, 1e-05
  %v610 = vadd.f32 %v606, 1e-05
  %v611 = vadd.f32 %v607, 1e-05
  %v612 = vrsqrt.pop %v608
  %v613 = vmul.f32 %v612, %v608
  %v614 = vmul.f32 %v613, %v612
  %v615 = vmul.f32 0.5, %v614
  %v616 = vsub.f32 1.5, %v615
  %v617 = vmul.f32 %v612, %v616
  %vm618 = vweird.f32 %v608
  %vm619 = vweird.f32 %v612
  %vm620 = vmor %vm618, %vm619
  %v621 = vsel %vm620, %v612, %v617
  %v622 = vrsqrt.pop %v609
  %v623 = vmul.f32 %v622, %v609
  %v624 = vmul.f32 %v623, %v622
  %v625 = vmul.f32 0.5, %v624
  %v626 = vsub.f32 1.5, %v625
  %v627 = vmul.f32 %v622, %v626
  %vm628 = vweird.f32 %v609
  %vm629 = vweird.f32 %v622
  %vm630 = vmor %vm628, %vm629
  %v631 = vsel %vm630, %v622, %v627
  %v632 = vrsqrt.pop %v610
  %v633 = vmul.f32 %v632, %v610
  %v634 = vmul.f32 %v633, %v632
  %v635 = vmul.f32 0.5, %v634
  %v636 = vsub.f32 1.5, %v635
  %v637 = vmul.f32 %v632, %v636
  %vm638 = vweird.f32 %v610
  %vm639 = vweird.f32 %v632
  %vm640 = vmor %vm638, %vm639
  %v641 = vsel %vm640, %v632, %v637
  %v642 = vrsqrt.pop %v611
  %v643 = vmul.f32 %v642, %v611
  %v644 = vmul.f32 %v643, %v642
  %v645 = vmul.f32 0.5, %v644
  %v646 = vsub.f32 1.5, %v645
  %v647 = vmul.f32 %v642, %v646
  %vm648 = vweird.f32 %v611
  %vm649 = vweird.f32 %v642
  %vm650 = vmor %vm648, %vm649
  %v651 = vsel %vm650, %v642, %v647
  %v652 = vmul.f32 %v584, %v621
  %v653 = vmul.f32 %v585, %v631
  %v654 = vmul.f32 %v586, %v641
  %v655 = vmul.f32 %v587, %v651
  %v657 = vperm.slane %v558, 0
  %v659 = vmul.f32 %v652, %v657
  %v660 = vmul.f32 %v653, %v657
  %v661 = vmul.f32 %v654, %v657
  %v662 = vmul.f32 %v655, %v657
  %v664 = vperm.slane %v559, 0
  %v666 = vadd.f32 %v659, %v664
  %v667 = vadd.f32 %v660, %v664
  %v668 = vadd.f32 %v661, %v664
  %v669 = vadd.f32 %v662, %v664
  %670 = vst.msk [vmem:[%s5] sm:$0xff] %vm560, %v666
  %671 = vst.msk [vmem:[%s5 + $0x8] sm:$0xff] %vm560, %v667
  %672 = vst.msk [vmem:[%s5 + $0x10] sm:$0xff] %vm560, %v668
  %673 = vst.msk [vmem:[%s5 + $0x18] sm:$0xff] %vm560, %v669
  // Predicated region
  $region22: #{fomc_forward.4} parent=0 // pred_check
    _
  $region23: #{fomc_forward.4} parent=0 // pred_check_branch
    %675 = sbr.rel (0) target = $region25
  $region24: #{fomc_forward.4} parent=0 // pred_region
    _
  $region25: #{fomc_forward.4} parent=0 // pred_fallthru
    _
  // Predicated region
  $region26: #{fomc_forward.4} parent=0 // pred_check
    _
  $region27: #{fomc_forward.4} parent=0 // pred_check_branch
    %677 = sbr.rel (0) target = $region29
  $region28: #{fomc_forward.4} parent=0 // pred_region
    _
  $region29: #{fomc_forward.4} parent=0 // pred_fallthru
    _

// kernel: fomc_forward.5
$region0: #{fomc_forward.5}
  #allocation0 [shape = 'u32[]', space=smem, size = 0x4, offset = 0x4, fixed_abs, tag = 'smem constant byte address 0x4 - core index']
  #allocation1 [shape = 'u32[72,128]{1,0:T(1,128)}', space=vmem, size = 0x9000, scoped, tag = 'internal scratch']
  %s0 = inlined_call_operand.vmem [shape: f32[32,32], index: 0, kind: input, shape index: {}]
  %s1 = inlined_call_operand.vmem [shape: bf16[32,96], index: 1, kind: input, shape index: {}]
  %s2 = inlined_call_operand.vmem [shape: f32[1,96], index: 2, kind: input, shape index: {}]
  %s3 = inlined_call_operand.vmem [shape: bf16[32,32], index: 3, kind: input, shape index: {}]
  %s4 = inlined_call_operand.vmem [shape: f32[1,32], index: 4, kind: input, shape index: {}]
  %s5 = inlined_call_operand.vmem [shape: f32[1,32], index: 5, kind: input, shape index: {}]
  %s6 = inlined_call_operand.vmem [shape: f32[1,32], index: 6, kind: input, shape index: {}]
  %s7 = inlined_call_operand.vmem [shape: f32[32,32], index: 7, kind: output, shape index: {}]
  %s8 = sld [smem:[#allocation0]]
  $region38: #{fomc_forward.5} parent=0
    _
  %s10 = ssub.s32 1, %s8
  %s11 = scalar_select 0, %s10, %s8
  // Predicated region
  $region2: #{fomc_forward.5} parent=0 // pred_check
    _
  $region3: #{fomc_forward.5} parent=0 // pred_check_branch
    %13 = sbr.rel (0) target = $region5
  $region4: #{fomc_forward.5} parent=0 // pred_region
    _
  $region5: #{fomc_forward.5} parent=0 // pred_fallthru
    _
  // Predicated region
  $region6: #{fomc_forward.5} parent=0 // pred_check
    _
  $region7: #{fomc_forward.5} parent=0 // pred_check_branch
    %15 = sbr.rel (0) target = $region9
  $region8: #{fomc_forward.5} parent=0 // pred_region
    _
  $region9: #{fomc_forward.5} parent=0 // pred_fallthru
    _
  // Predicated region
  $region10: #{fomc_forward.5} parent=0 // pred_check
    _
  $region11: #{fomc_forward.5} parent=0 // pred_check_branch
    %17 = sbr.rel (0) target = $region13
  $region12: #{fomc_forward.5} parent=0 // pred_region
    _
  $region13: #{fomc_forward.5} parent=0 // pred_fallthru
    _
  // Predicated region
  $region14: #{fomc_forward.5} parent=0 // pred_check
    _
  $region15: #{fomc_forward.5} parent=0 // pred_check_branch
    %19 = sbr.rel (0) target = $region17
  $region16: #{fomc_forward.5} parent=0 // pred_region
    _
  $region17: #{fomc_forward.5} parent=0 // pred_fallthru
    _
  // Predicated region
  $region18: #{fomc_forward.5} parent=0 // pred_check
    _
  $region19: #{fomc_forward.5} parent=0 // pred_check_branch
    %21 = sbr.rel (0) target = $region21
  $region20: #{fomc_forward.5} parent=0 // pred_region
    _
  $region21: #{fomc_forward.5} parent=0 // pred_fallthru
    _
  // Predicated region
  $region22: #{fomc_forward.5} parent=0 // pred_check
    _
  $region23: #{fomc_forward.5} parent=0 // pred_check_branch
    %23 = sbr.rel (0) target = $region25
  $region24: #{fomc_forward.5} parent=0 // pred_region
    _
  $region25: #{fomc_forward.5} parent=0 // pred_fallthru
    _
  // Predicated region
  $region26: #{fomc_forward.5} parent=0 // pred_check
    _
  $region27: #{fomc_forward.5} parent=0 // pred_check_branch
    %25 = sbr.rel (0) target = $region29
  $region28: #{fomc_forward.5} parent=0 // pred_region
    _
  $region29: #{fomc_forward.5} parent=0 // pred_fallthru
    _
  %v27 = vld [vmem:[%s0] sm:$0xff]
  %v28 = vld [vmem:[%s0 + $0x8] sm:$0xff]
  %v29 = vld [vmem:[%s0 + $0x10] sm:$0xff]
  %v30 = vld [vmem:[%s0 + $0x18] sm:$0xff]
  %v31 = vpack.c.bf16 %v28, %v27
  %v32 = vpack.c.bf16 %v30, %v29
  %v33 = vld [vmem:[%s1] sm:$0xf]
  %v34 = vld [vmem:[%s1 + $0x4] sm:$0xf]
  %v35 = vld [vmem:[%s1 + $0x8] sm:$0xf]
  %v36 = vld [vmem:[%s1 + $0xc] sm:$0xf]
  %v37 = vld [vmem:[%s2] sm:$0x1]
  %v39 = vperm.slane %v37, 0
  %v45 = vunpack.c.l.b16 %v33
  %v46 = vunpack.c.l.b16 %v34
  %v47 = vunpack.c.l.b16 %v35
  %v48 = vunpack.c.l.b16 %v36
  %v49 = vpack.c.b16 %v46, %v45
  %v50 = vpack.c.b16 %v48, %v47
  %vm53 = vcmask 261120
  %v55 = vsel %vm53, %v31, 0
  %v58 = vsel %vm53, %v32, 0
  %60 = vmatpush.bf16.msra.mxu0 0
  %61 = vmatpush.bf16.msra.mxu0 0
  %62 = vmatpush.bf16.msra.mxu0 0
  %63 = vmatpush.bf16.msra.mxu0 0
  %64 = vmatpush.bf16.msra.mxu0 0
  %65 = vmatpush.bf16.msra.mxu0 0
  %66 = vmatpush.bf16.msra.mxu0 %v50
  %67 = vmatpush.bf16.msra.mxu0 %v49
  %68 = vmatmul.bf16.gmra.mxu0 %v55
  %v69 = vpop.f32.mrf.mxu0
  %v70 = vadd.f32 %v39, %v69
  %v71 = vpop.f32.mrf.mxu0
  %v72 = vadd.f32 %v39, %v71
  %73 = vmatmul.bf16.gmra.mxu0 %v58
  %v74 = vpop.f32.mrf.mxu0
  %v75 = vadd.f32 %v39, %v74
  %v76 = vpop.f32.mrf.mxu0
  %v77 = vadd.f32 %v39, %v76
  %78 = vdwg.mxu0
  %v79 = vld [vmem:[%s3] sm:$0xf]
  %v80 = vld [vmem:[%s3 + $0x4] sm:$0xf]
  %v81 = vld [vmem:[%s3 + $0x8] sm:$0xf]
  %v82 = vld [vmem:[%s3 + $0xc] sm:$0xf]
  %v83 = vpack.c.bf16 %v70, %v70
  %v84 = vpack.c.bf16 %v72, %v72
  %v85 = vpack.c.bf16 %v75, %v75
  %v86 = vpack.c.bf16 %v77, %v77
  %v89 = vunpack.c.l.b16 %v83
  %v90 = vunpack.c.l.b16 %v84
  %v91 = vpack.c.b16 %v90, %v89
  %92 = vrot.lane.b32.xlu0 %v91, 96
  %v93 = vpop.permute.xlu0 %92
  %vm94 = vcmask 64512
  %v96 = vsel %vm94, %v91, 0
  %v99 = vsel %vm94, %v93, 0
  %101 = vmatpush.bf16.xpose.msra.mxu0 0
  %102 = vmatpush.bf16.xpose.msra.mxu0 0
  %103 = vmatpush.bf16.xpose.msra.mxu0 0
  %104 = vmatpush.bf16.xpose.msra.mxu0 0
  %105 = vmatpush.bf16.xpose.msra.mxu0 0
  %106 = vmatpush.bf16.xpose.msra.mxu0 0
  %107 = vmatpush.bf16.xpose.msra.mxu0 0
  %108 = vmatpush.bf16.xpose.msra.mxu0 %v99
  %109 = vmatmul.bf16.gmra.mxu0 %v96
  %v110 = vpop.f32.mrf.mxu0
  %v111 = vadd.f32 0.0, %v110
  %v112 = vpop.f32.mrf.mxu0
  %v113 = vadd.f32 0.0, %v112
  %114 = vdwg.mxu0
  %v117 = vunpack.c.l.b16 %v85
  %v118 = vunpack.c.l.b16 %v86
  %v119 = vpack.c.b16 %v118, %v117
  %120 = vrot.lane.b32.xlu0 %v119, 96
  %v121 = vpop.permute.xlu0 %120
  %v123 = vsel %vm94, %v119, 0
  %v126 = vsel %vm94, %v121, 0
  %128 = vmatpush.bf16.xpose.msra.mxu0 0
  %129 = vmatpush.bf16.xpose.msra.mxu0 0
  %130 = vmatpush.bf16.xpose.msra.mxu0 0
  %131 = vmatpush.bf16.xpose.msra.mxu0 0
  %132 = vmatpush.bf16.xpose.msra.mxu0 0
  %133 = vmatpush.bf16.xpose.msra.mxu0 0
  %134 = vmatpush.bf16.xpose.msra.mxu0 0
  %135 = vmatpush.bf16.xpose.msra.mxu0 %v126
  %136 = vmatmul.bf16.gmra.mxu0 %v123
  %v137 = vpop.f32.mrf.mxu0
  %v138 = vadd.f32 0.0, %v137
  %v139 = vpop.f32.mrf.mxu0
  %v140 = vadd.f32 0.0, %v139
  %141 = vdwg.mxu0
  %v142 = vmul.f32 %v111, 0.35355338
  %v143 = vmul.f32 %v113, 0.35355338
  %v144 = vmul.f32 %v138, 0.35355338
  %v145 = vmul.f32 %v140, 0.35355338
  %vm146 = vcmask 130048
  %v147 = vsel %vm146, %v142, -inf
  %148 = vmax.xlane.f32.xlu0 %v147
  %v149 = vpop.xlane.xlu0 %148
  %v150 = vsel %vm146, %v143, -inf
  %151 = vmax.xlane.f32.xlu0 %v150
  %v152 = vpop.xlane.xlu0 %151
  %v153 = vsel %vm146, %v144, -inf
  %154 = vmax.xlane.f32.xlu0 %v153
  %v155 = vpop.xlane.xlu0 %154
  %v156 = vsel %vm146, %v145, -inf
  %157 = vmax.xlane.f32.xlu0 %v156
  %v158 = vpop.xlane.xlu0 %157
  %v159 = vsub.f32 %v142, %v149
  %v160 = vsub.f32 %v143, %v152
  %v161 = vsub.f32 %v144, %v155
  %v162 = vsub.f32 %v145, %v158
  %v163 = vmul.f32 %v159, 1.442695
  %v164 = vpow.pop %v163
  %v165 = vmul.f32 %v160, 1.442695
  %v166 = vpow.pop %v165
  %v167 = vmul.f32 %v161, 1.442695
  %v168 = vpow.pop %v167
  %v169 = vmul.f32 %v162, 1.442695
  %v170 = vpow.pop %v169
  %v171 = vsel %vm146, %v164, 0.0
  %172 = vadd.xlane.f32.xlu0 %v171
  %v173 = vpop.xlane.xlu0 %172
  %v174 = vsel %vm146, %v166, 0.0
  %175 = vadd.xlane.f32.xlu0 %v174
  %v176 = vpop.xlane.xlu0 %175
  %v177 = vsel %vm146, %v168, 0.0
  %178 = vadd.xlane.f32.xlu0 %v177
  %v179 = vpop.xlane.xlu0 %178
  %v180 = vsel %vm146, %v170, 0.0
  %181 = vadd.xlane.f32.xlu0 %v180
  %v182 = vpop.xlane.xlu0 %181
  %v183 = vrcp.pop %v173
  %v184 = vrcp.pop %v176
  %v185 = vrcp.pop %v179
  %v186 = vrcp.pop %v182
  %v187 = vmul.f32 %v164, %v183
  %v188 = vmul.f32 %v166, %v184
  %v189 = vmul.f32 %v168, %v185
  %v190 = vmul.f32 %v170, %v186
  %v191 = vpack.c.bf16 %v187, %v187
  %v192 = vpack.c.bf16 %v188, %v188
  %v193 = vpack.c.bf16 %v189, %v189
  %v194 = vpack.c.bf16 %v190, %v190
  %v197 = vunpack.c.l.b16 %v191
  %v198 = vunpack.c.l.b16 %v192
  %v199 = vpack.c.b16 %v198, %v197
  %200 = vrot.lane.b32.xlu0 %v91, 64
  %v201 = vpop.permute.xlu0 %200
  %v204 = vsel %vm146, %v199, 0
  %206 = vmatpush.bf16.msra.mxu0 0
  %207 = vmatpush.bf16.msra.mxu0 0
  %208 = vmatpush.bf16.msra.mxu0 0
  %209 = vmatpush.bf16.msra.mxu0 0
  %210 = vmatpush.bf16.msra.mxu0 0
  %211 = vmatpush.bf16.msra.mxu0 0
  %212 = vmatpush.bf16.msra.mxu0 0
  %213 = vmatpush.bf16.msra.mxu0 %v201
  %214 = vmatmul.bf16.gmra.mxu0 %v204
  %v215 = vpop.f32.mrf.mxu0
  %v216 = vadd.f32 0.0, %v215
  %v217 = vpop.f32.mrf.mxu0
  %v218 = vadd.f32 0.0, %v217
  %219 = vdwg.mxu0
  %v222 = vunpack.c.l.b16 %v193
  %v223 = vunpack.c.l.b16 %v194
  %v224 = vpack.c.b16 %v223, %v222
  %225 = vrot.lane.b32.xlu0 %v119, 64
  %v226 = vpop.permute.xlu0 %225
  %v229 = vsel %vm146, %v224, 0
  %231 = vmatpush.bf16.msra.mxu0 0
  %232 = vmatpush.bf16.msra.mxu0 0
  %233 = vmatpush.bf16.msra.mxu0 0
  %234 = vmatpush.bf16.msra.mxu0 0
  %235 = vmatpush.bf16.msra.mxu0 0
  %236 = vmatpush.bf16.msra.mxu0 0
  %237 = vmatpush.bf16.msra.mxu0 0
  %238 = vmatpush.bf16.msra.mxu0 %v226
  %239 = vmatmul.bf16.gmra.mxu0 %v229
  %v240 = vpop.f32.mrf.mxu0
  %v241 = vadd.f32 0.0, %v240
  %v242 = vpop.f32.mrf.mxu0
  %v243 = vadd.f32 0.0, %v242
  %244 = vdwg.mxu0
  %v245 = vpack.c.bf16 %v218, %v216
  %v246 = vpack.c.bf16 %v243, %v241
  %247 = vrot.lane.b32.xlu0 %v91, 120
  %v248 = vpop.permute.xlu0 %247
  %249 = vrot.lane.b32.xlu0 %v91, 88
  %v250 = vpop.permute.xlu0 %249
  %v252 = vsel %vm94, %v248, 0
  %v255 = vsel %vm94, %v250, 0
  %257 = vmatpush.bf16.xpose.msra.mxu0 0
  %258 = vmatpush.bf16.xpose.msra.mxu0 0
  %259 = vmatpush.bf16.xpose.msra.mxu0 0
  %260 = vmatpush.bf16.xpose.msra.mxu0 0
  %261 = vmatpush.bf16.xpose.msra.mxu0 0
  %262 = vmatpush.bf16.xpose.msra.mxu0 0
  %263 = vmatpush.bf16.xpose.msra.mxu0 0
  %264 = vmatpush.bf16.xpose.msra.mxu0 %v255
  %265 = vmatmul.bf16.gmra.mxu0 %v252
  %v266 = vpop.f32.mrf.mxu0
  %v267 = vadd.f32 0.0, %v266
  %v268 = vpop.f32.mrf.mxu0
  %v269 = vadd.f32 0.0, %v268
  %270 = vdwg.mxu0
  %271 = vrot.lane.b32.xlu0 %v119, 120
  %v272 = vpop.permute.xlu0 %271
  %273 = vrot.lane.b32.xlu0 %v119, 88
  %v274 = vpop.permute.xlu0 %273
  %v276 = vsel %vm94, %v272, 0
  %v279 = vsel %vm94, %v274, 0
  %281 = vmatpush.bf16.xpose.msra.mxu0 0
  %282 = vmatpush.bf16.xpose.msra.mxu0 0
  %283 = vmatpush.bf16.xpose.msra.mxu0 0
  %284 = vmatpush.bf16.xpose.msra.mxu0 0
  %285 = vmatpush.bf16.xpose.msra.mxu0 0
  %286 = vmatpush.bf16.xpose.msra.mxu0 0
  %287 = vmatpush.bf16.xpose.msra.mxu0 0
  %288 = vmatpush.bf16.xpose.msra.mxu0 %v279
  %289 = vmatmul.bf16.gmra.mxu0 %v276
  %v290 = vpop.f32.mrf.mxu0
  %v291 = vadd.f32 0.0, %v290
  %v292 = vpop.f32.mrf.mxu0
  %v293 = vadd.f32 0.0, %v292
  %294 = vdwg.mxu0
  %v295 = vmul.f32 %v267, 0.35355338
  %v296 = vmul.f32 %v269, 0.35355338
  %v297 = vmul.f32 %v291, 0.35355338
  %v298 = vmul.f32 %v293, 0.35355338
  %v299 = vsel %vm146, %v295, -inf
  %300 = vmax.xlane.f32.xlu0 %v299
  %v301 = vpop.xlane.xlu0 %300
  %v302 = vsel %vm146, %v296, -inf
  %303 = vmax.xlane.f32.xlu0 %v302
  %v304 = vpop.xlane.xlu0 %303
  %v305 = vsel %vm146, %v297, -inf
  %306 = vmax.xlane.f32.xlu0 %v305
  %v307 = vpop.xlane.xlu0 %306
  %v308 = vsel %vm146, %v298, -inf
  %309 = vmax.xlane.f32.xlu0 %v308
  %v310 = vpop.xlane.xlu0 %309
  %v311 = vsub.f32 %v295, %v301
  %v312 = vsub.f32 %v296, %v304
  %v313 = vsub.f32 %v297, %v307
  %v314 = vsub.f32 %v298, %v310
  %v315 = vmul.f32 %v311, 1.442695
  %v316 = vpow.pop %v315
  %v317 = vmul.f32 %v312, 1.442695
  %v318 = vpow.pop %v317
  %v319 = vmul.f32 %v313, 1.442695
  %v320 = vpow.pop %v319
  %v321 = vmul.f32 %v314, 1.442695
  %v322 = vpow.pop %v321
  %v323 = vsel %vm146, %v316, 0.0
  %324 = vadd.xlane.f32.xlu0 %v323
  %v325 = vpop.xlane.xlu0 %324
  %v326 = vsel %vm146, %v318, 0.0
  %327 = vadd.xlane.f32.xlu0 %v326
  %v328 = vpop.xlane.xlu0 %327
  %v329 = vsel %vm146, %v320, 0.0
  %330 = vadd.xlane.f32.xlu0 %v329
  %v331 = vpop.xlane.xlu0 %330
  %v332 = vsel %vm146, %v322, 0.0
  %333 = vadd.xlane.f32.xlu0 %v332
  %v334 = vpop.xlane.xlu0 %333
  %v335 = vrcp.pop %v325
  %v336 = vrcp.pop %v328
  %v337 = vrcp.pop %v331
  %v338 = vrcp.pop %v334
  %v339 = vmul.f32 %v316, %v335
  %v340 = vmul.f32 %v318, %v336
  %v341 = vmul.f32 %v320, %v337
  %v342 = vmul.f32 %v322, %v338
  %v343 = vpack.c.bf16 %v339, %v339
  %v344 = vpack.c.bf16 %v340, %v340
  %v345 = vpack.c.bf16 %v341, %v341
  %v346 = vpack.c.bf16 %v342, %v342
  %v349 = vunpack.c.l.b16 %v343
  %v350 = vunpack.c.l.b16 %v344
  %v351 = vpack.c.b16 %v350, %v349
  %352 = vrot.lane.b32.xlu0 %v91, 56
  %v353 = vpop.permute.xlu0 %352
  %v356 = vsel %vm146, %v351, 0
  %358 = vmatpush.bf16.msra.mxu0 0
  %359 = vmatpush.bf16.msra.mxu0 0
  %360 = vmatpush.bf16.msra.mxu0 0
  %361 = vmatpush.bf16.msra.mxu0 0
  %362 = vmatpush.bf16.msra.mxu0 0
  %363 = vmatpush.bf16.msra.mxu0 0
  %364 = vmatpush.bf16.msra.mxu0 0
  %365 = vmatpush.bf16.msra.mxu0 %v353
  %366 = vmatmul.bf16.gmra.mxu0 %v356
  %v367 = vpop.f32.mrf.mxu0
  %v368 = vadd.f32 0.0, %v367
  %v369 = vpop.f32.mrf.mxu0
  %v370 = vadd.f32 0.0, %v369
  %371 = vdwg.mxu0
  %v374 = vunpack.c.l.b16 %v345
  %v375 = vunpack.c.l.b16 %v346
  %v376 = vpack.c.b16 %v375, %v374
  %377 = vrot.lane.b32.xlu0 %v119, 56
  %v378 = vpop.permute.xlu0 %377
  %v381 = vsel %vm146, %v376, 0
  %383 = vmatpush.bf16.msra.mxu0 0
  %384 = vmatpush.bf16.msra.mxu0 0
  %385 = vmatpush.bf16.msra.mxu0 0
  %386 = vmatpush.bf16.msra.mxu0 0
  %387 = vmatpush.bf16.msra.mxu0 0
  %388 = vmatpush.bf16.msra.mxu0 0
  %389 = vmatpush.bf16.msra.mxu0 0
  %390 = vmatpush.bf16.msra.mxu0 %v378
  %391 = vmatmul.bf16.gmra.mxu0 %v381
  %v392 = vpop.f32.mrf.mxu0
  %v393 = vadd.f32 0.0, %v392
  %v394 = vpop.f32.mrf.mxu0
  %v395 = vadd.f32 0.0, %v394
  %396 = vdwg.mxu0
  %v397 = vpack.c.bf16 %v370, %v368
  %v398 = vpack.c.bf16 %v395, %v393
  %v400 = vsel %vm94, %v397, 0
  %v403 = vsel %vm94, %v398, 0
  %vm405 = vcmask 1043456
  %v407 = vsel %vm405, %v80, 0
  %409 = vmatpush.bf16.msra.mxu0 0
  %410 = vmatpush.bf16.msra.mxu0 0
  %411 = vmatpush.bf16.msra.mxu0 0
  %412 = vmatpush.bf16.msra.mxu0 0
  %413 = vmatpush.bf16.msra.mxu0 0
  %414 = vmatpush.bf16.msra.mxu0 0
  %415 = vmatpush.bf16.msra.mxu0 0
  %416 = vmatpush.bf16.msra.mxu0 %v407
  %417 = vmatmul.bf16.gmra.mxu0 %v400
  %v418 = vpop.f32.mrf.mxu0
  %v419 = vadd.f32 0.0, %v418
  %v420 = vpop.f32.mrf.mxu0
  %v421 = vadd.f32 0.0, %v420
  %422 = vmatmul.bf16.gmra.mxu0 %v403
  %v423 = vpop.f32.mrf.mxu0
  %v424 = vadd.f32 0.0, %v423
  %v425 = vpop.f32.mrf.mxu0
  %v426 = vadd.f32 0.0, %v425
  %427 = vdwg.mxu0
  %v429 = vsel %vm94, %v245, 0
  %v432 = vsel %vm94, %v246, 0
  %v435 = vsel %vm405, %v79, 0
  %437 = vmatpush.bf16.msra.mxu0 0
  %438 = vmatpush.bf16.msra.mxu0 0
  %439 = vmatpush.bf16.msra.mxu0 0
  %440 = vmatpush.bf16.msra.mxu0 0
  %441 = vmatpush.bf16.msra.mxu0 0
  %442 = vmatpush.bf16.msra.mxu0 0
  %443 = vmatpush.bf16.msra.mxu0 0
  %444 = vmatpush.bf16.msra.mxu0 %v435
  %445 = vmatmul.bf16.gmra.mxu0 %v429
  %v446 = vpop.f32.mrf.mxu0
  %v447 = vadd.f32 %v419, %v446
  %v448 = vpop.f32.mrf.mxu0
  %v449 = vadd.f32 %v421, %v448
  %450 = vmatmul.bf16.gmra.mxu0 %v432
  %v451 = vpop.f32.mrf.mxu0
  %v452 = vadd.f32 %v424, %v451
  %v453 = vpop.f32.mrf.mxu0
  %v454 = vadd.f32 %v426, %v453
  %455 = vdwg.mxu0
  %456 = vrot.lane.b32.xlu0 %v91, 112
  %v457 = vpop.permute.xlu0 %456
  %458 = vrot.lane.b32.xlu0 %v91, 80
  %v459 = vpop.permute.xlu0 %458
  %v461 = vsel %vm94, %v457, 0
  %v464 = vsel %vm94, %v459, 0
  %466 = vmatpush.bf16.xpose.msra.mxu0 0
  %467 = vmatpush.bf16.xpose.msra.mxu0 0
  %468 = vmatpush.bf16.xpose.msra.mxu0 0
  %469 = vmatpush.bf16.xpose.msra.mxu0 0
  %470 = vmatpush.bf16.xpose.msra.mxu0 0
  %471 = vmatpush.bf16.xpose.msra.mxu0 0
  %472 = vmatpush.bf16.xpose.msra.mxu0 0
  %473 = vmatpush.bf16.xpose.msra.mxu0 %v464
  %474 = vmatmul.bf16.gmra.mxu0 %v461
  %v475 = vpop.f32.mrf.mxu0
  %v476 = vadd.f32 0.0, %v475
  %v477 = vpop.f32.mrf.mxu0
  %v478 = vadd.f32 0.0, %v477
  %479 = vdwg.mxu0
  %480 = vrot.lane.b32.xlu0 %v119, 112
  %v481 = vpop.permute.xlu0 %480
  %482 = vrot.lane.b32.xlu0 %v119, 80
  %v483 = vpop.permute.xlu0 %482
  %v485 = vsel %vm94, %v481, 0
  %v488 = vsel %vm94, %v483, 0
  %490 = vmatpush.bf16.xpose.msra.mxu0 0
  %491 = vmatpush.bf16.xpose.msra.mxu0 0
  %492 = vmatpush.bf16.xpose.msra.mxu0 0
  %493 = vmatpush.bf16.xpose.msra.mxu0 0
  %494 = vmatpush.bf16.xpose.msra.mxu0 0
  %495 = vmatpush.bf16.xpose.msra.mxu0 0
  %496 = vmatpush.bf16.xpose.msra.mxu0 0
  %497 = vmatpush.bf16.xpose.msra.mxu0 %v488
  %498 = vmatmul.bf16.gmra.mxu0 %v485
  %v499 = vpop.f32.mrf.mxu0
  %v500 = vadd.f32 0.0, %v499
  %v501 = vpop.f32.mrf.mxu0
  %v502 = vadd.f32 0.0, %v501
  %503 = vdwg.mxu0
  %v504 = vmul.f32 %v476, 0.35355338
  %v505 = vmul.f32 %v478, 0.35355338
  %v506 = vmul.f32 %v500, 0.35355338
  %v507 = vmul.f32 %v502, 0.35355338
  %v508 = vsel %vm146, %v504, -inf
  %509 = vmax.xlane.f32.xlu0 %v508
  %v510 = vpop.xlane.xlu0 %509
  %v511 = vsel %vm146, %v505, -inf
  %512 = vmax.xlane.f32.xlu0 %v511
  %v513 = vpop.xlane.xlu0 %512
  %v514 = vsel %vm146, %v506, -inf
  %515 = vmax.xlane.f32.xlu0 %v514
  %v516 = vpop.xlane.xlu0 %515
  %v517 = vsel %vm146, %v507, -inf
  %518 = vmax.xlane.f32.xlu0 %v517
  %v519 = vpop.xlane.xlu0 %518
  %v520 = vsub.f32 %v504, %v510
  %v521 = vsub.f32 %v505, %v513
  %v522 = vsub.f32 %v506, %v516
  %v523 = vsub.f32 %v507, %v519
  %v524 = vmul.f32 %v520, 1.442695
  %v525 = vpow.pop %v524
  %v526 = vmul.f32 %v521, 1.442695
  %v527 = vpow.pop %v526
  %v528 = vmul.f32 %v522, 1.442695
  %v529 = vpow.pop %v528
  %v530 = vmul.f32 %v523, 1.442695
  %v531 = vpow.pop %v530
  %v532 = vsel %vm146, %v525, 0.0
  %533 = vadd.xlane.f32.xlu0 %v532
  %v534 = vpop.xlane.xlu0 %533
  %v535 = vsel %vm146, %v527, 0.0
  %536 = vadd.xlane.f32.xlu0 %v535
  %v537 = vpop.xlane.xlu0 %536
  %v538 = vsel %vm146, %v529, 0.0
  %539 = vadd.xlane.f32.xlu0 %v538
  %v540 = vpop.xlane.xlu0 %539
  %v541 = vsel %vm146, %v531, 0.0
  %542 = vadd.xlane.f32.xlu0 %v541
  %v543 = vpop.xlane.xlu0 %542
  %v544 = vrcp.pop %v534
  %v545 = vrcp.pop %v537
  %v546 = vrcp.pop %v540
  %v547 = vrcp.pop %v543
  %v548 = vmul.f32 %v525, %v544
  %v549 = vmul.f32 %v527, %v545
  %v550 = vmul.f32 %v529, %v546
  %v551 = vmul.f32 %v531, %v547
  %v552 = vpack.c.bf16 %v548, %v548
  %v553 = vpack.c.bf16 %v549, %v549
  %v554 = vpack.c.bf16 %v550, %v550
  %v555 = vpack.c.bf16 %v551, %v551
  %v558 = vunpack.c.l.b16 %v552
  %v559 = vunpack.c.l.b16 %v553
  %v560 = vpack.c.b16 %v559, %v558
  %561 = vrot.lane.b32.xlu0 %v91, 48
  %v562 = vpop.permute.xlu0 %561
  %v565 = vsel %vm146, %v560, 0
  %567 = vmatpush.bf16.msra.mxu0 0
  %568 = vmatpush.bf16.msra.mxu0 0
  %569 = vmatpush.bf16.msra.mxu0 0
  %570 = vmatpush.bf16.msra.mxu0 0
  %571 = vmatpush.bf16.msra.mxu0 0
  %572 = vmatpush.bf16.msra.mxu0 0
  %573 = vmatpush.bf16.msra.mxu0 0
  %574 = vmatpush.bf16.msra.mxu0 %v562
  %575 = vmatmul.bf16.gmra.mxu0 %v565
  %v576 = vpop.f32.mrf.mxu0
  %v577 = vadd.f32 0.0, %v576
  %v578 = vpop.f32.mrf.mxu0
  %v579 = vadd.f32 0.0, %v578
  %580 = vdwg.mxu0
  %v583 = vunpack.c.l.b16 %v554
  %v584 = vunpack.c.l.b16 %v555
  %v585 = vpack.c.b16 %v584, %v583
  %586 = vrot.lane.b32.xlu0 %v119, 48
  %v587 = vpop.permute.xlu0 %586
  %v590 = vsel %vm146, %v585, 0
  %592 = vmatpush.bf16.msra.mxu0 0
  %593 = vmatpush.bf16.msra.mxu0 0
  %594 = vmatpush.bf16.msra.mxu0 0
  %595 = vmatpush.bf16.msra.mxu0 0
  %596 = vmatpush.bf16.msra.mxu0 0
  %597 = vmatpush.bf16.msra.mxu0 0
  %598 = vmatpush.bf16.msra.mxu0 0
  %599 = vmatpush.bf16.msra.mxu0 %v587
  %600 = vmatmul.bf16.gmra.mxu0 %v590
  %v601 = vpop.f32.mrf.mxu0
  %v602 = vadd.f32 0.0, %v601
  %v603 = vpop.f32.mrf.mxu0
  %v604 = vadd.f32 0.0, %v603
  %605 = vdwg.mxu0
  %v606 = vpack.c.bf16 %v579, %v577
  %v607 = vpack.c.bf16 %v604, %v602
  %v609 = vsel %vm94, %v606, 0
  %v612 = vsel %vm94, %v607, 0
  %v615 = vsel %vm405, %v81, 0
  %617 = vmatpush.bf16.msra.mxu0 0
  %618 = vmatpush.bf16.msra.mxu0 0
  %619 = vmatpush.bf16.msra.mxu0 0
  %620 = vmatpush.bf16.msra.mxu0 0
  %621 = vmatpush.bf16.msra.mxu0 0
  %622 = vmatpush.bf16.msra.mxu0 0
  %623 = vmatpush.bf16.msra.mxu0 0
  %624 = vmatpush.bf16.msra.mxu0 %v615
  %625 = vmatmul.bf16.gmra.mxu0 %v609
  %v626 = vpop.f32.mrf.mxu0
  %v627 = vadd.f32 0.0, %v626
  %v628 = vpop.f32.mrf.mxu0
  %v629 = vadd.f32 0.0, %v628
  %630 = vmatmul.bf16.gmra.mxu0 %v612
  %v631 = vpop.f32.mrf.mxu0
  %v632 = vadd.f32 0.0, %v631
  %v633 = vpop.f32.mrf.mxu0
  %v634 = vadd.f32 0.0, %v633
  %635 = vdwg.mxu0
  %v636 = vadd.f32 %v447, %v627
  %v637 = vadd.f32 %v449, %v629
  %v638 = vadd.f32 %v452, %v632
  %v639 = vadd.f32 %v454, %v634
  %640 = vrot.lane.b32.xlu0 %v91, 104
  %v641 = vpop.permute.xlu0 %640
  %642 = vrot.lane.b32.xlu0 %v91, 72
  %v643 = vpop.permute.xlu0 %642
  %v645 = vsel %vm94, %v641, 0
  %v648 = vsel %vm94, %v643, 0
  %650 = vmatpush.bf16.xpose.msra.mxu0 0
  %651 = vmatpush.bf16.xpose.msra.mxu0 0
  %652 = vmatpush.bf16.xpose.msra.mxu0 0
  %653 = vmatpush.bf16.xpose.msra.mxu0 0
  %654 = vmatpush.bf16.xpose.msra.mxu0 0
  %655 = vmatpush.bf16.xpose.msra.mxu0 0
  %656 = vmatpush.bf16.xpose.msra.mxu0 0
  %657 = vmatpush.bf16.xpose.msra.mxu0 %v648
  %658 = vmatmul.bf16.gmra.mxu0 %v645
  %v659 = vpop.f32.mrf.mxu0
  %v660 = vadd.f32 0.0, %v659
  %v661 = vpop.f32.mrf.mxu0
  %v662 = vadd.f32 0.0, %v661
  %663 = vdwg.mxu0
  %664 = vrot.lane.b32.xlu0 %v119, 104
  %v665 = vpop.permute.xlu0 %664
  %666 = vrot.lane.b32.xlu0 %v119, 72
  %v667 = vpop.permute.xlu0 %666
  %v669 = vsel %vm94, %v665, 0
  %v672 = vsel %vm94, %v667, 0
  %674 = vmatpush.bf16.xpose.msra.mxu0 0
  %675 = vmatpush.bf16.xpose.msra.mxu0 0
  %676 = vmatpush.bf16.xpose.msra.mxu0 0
  %677 = vmatpush.bf16.xpose.msra.mxu0 0
  %678 = vmatpush.bf16.xpose.msra.mxu0 0
  %679 = vmatpush.bf16.xpose.msra.mxu0 0
  %680 = vmatpush.bf16.xpose.msra.mxu0 0
  %681 = vmatpush.bf16.xpose.msra.mxu0 %v672
  %682 = vmatmul.bf16.gmra.mxu0 %v669
  %v683 = vpop.f32.mrf.mxu0
  %v684 = vadd.f32 0.0, %v683
  %v685 = vpop.f32.mrf.mxu0
  %v686 = vadd.f32 0.0, %v685
  %687 = vdwg.mxu0
  %v688 = vmul.f32 %v660, 0.35355338
  %v689 = vmul.f32 %v662, 0.35355338
  %v690 = vmul.f32 %v684, 0.35355338
  %v691 = vmul.f32 %v686, 0.35355338
  %v692 = vsel %vm146, %v688, -inf
  %693 = vmax.xlane.f32.xlu0 %v692
  %v694 = vpop.xlane.xlu0 %693
  %v695 = vsel %vm146, %v689, -inf
  %696 = vmax.xlane.f32.xlu0 %v695
  %v697 = vpop.xlane.xlu0 %696
  %v698 = vsel %vm146, %v690, -inf
  %699 = vmax.xlane.f32.xlu0 %v698
  %v700 = vpop.xlane.xlu0 %699
  %v701 = vsel %vm146, %v691, -inf
  %702 = vmax.xlane.f32.xlu0 %v701
  %v703 = vpop.xlane.xlu0 %702
  %v704 = vsub.f32 %v688, %v694
  %v705 = vsub.f32 %v689, %v697
  %v706 = vsub.f32 %v690, %v700
  %v707 = vsub.f32 %v691, %v703
  %v708 = vmul.f32 %v704, 1.442695
  %v709 = vpow.pop %v708
  %v710 = vmul.f32 %v705, 1.442695
  %v711 = vpow.pop %v710
  %v712 = vmul.f32 %v706, 1.442695
  %v713 = vpow.pop %v712
  %v714 = vmul.f32 %v707, 1.442695
  %v715 = vpow.pop %v714
  %v716 = vsel %vm146, %v709, 0.0
  %717 = vadd.xlane.f32.xlu0 %v716
  %v718 = vpop.xlane.xlu0 %717
  %v719 = vsel %vm146, %v711, 0.0
  %720 = vadd.xlane.f32.xlu0 %v719
  %v721 = vpop.xlane.xlu0 %720
  %v722 = vsel %vm146, %v713, 0.0
  %723 = vadd.xlane.f32.xlu0 %v722
  %v724 = vpop.xlane.xlu0 %723
  %v725 = vsel %vm146, %v715, 0.0
  %726 = vadd.xlane.f32.xlu0 %v725
  %v727 = vpop.xlane.xlu0 %726
  %v728 = vrcp.pop %v718
  %v729 = vrcp.pop %v721
  %v730 = vrcp.pop %v724
  %v731 = vrcp.pop %v727
  %v732 = vmul.f32 %v709, %v728
  %v733 = vmul.f32 %v711, %v729
  %v734 = vmul.f32 %v713, %v730
  %v735 = vmul.f32 %v715, %v731
  %v736 = vpack.c.bf16 %v732, %v732
  %v737 = vpack.c.bf16 %v733, %v733
  %v738 = vpack.c.bf16 %v734, %v734
  %v739 = vpack.c.bf16 %v735, %v735
  %v742 = vunpack.c.l.b16 %v736
  %v743 = vunpack.c.l.b16 %v737
  %v744 = vpack.c.b16 %v743, %v742
  %745 = vrot.lane.b32.xlu0 %v91, 40
  %v746 = vpop.permute.xlu0 %745
  %v749 = vsel %vm146, %v744, 0
  %751 = vmatpush.bf16.msra.mxu0 0
  %752 = vmatpush.bf16.msra.mxu0 0
  %753 = vmatpush.bf16.msra.mxu0 0
  %754 = vmatpush.bf16.msra.mxu0 0
  %755 = vmatpush.bf16.msra.mxu0 0
  %756 = vmatpush.bf16.msra.mxu0 0
  %757 = vmatpush.bf16.msra.mxu0 0
  %758 = vmatpush.bf16.msra.mxu0 %v746
  %759 = vmatmul.bf16.gmra.mxu0 %v749
  %v760 = vpop.f32.mrf.mxu0
  %v761 = vadd.f32 0.0, %v760
  %v762 = vpop.f32.mrf.mxu0
  %v763 = vadd.f32 0.0, %v762
  %764 = vdwg.mxu0
  %v767 = vunpack.c.l.b16 %v738
  %v768 = vunpack.c.l.b16 %v739
  %v769 = vpack.c.b16 %v768, %v767
  %770 = vrot.lane.b32.xlu0 %v119, 40
  %v771 = vpop.permute.xlu0 %770
  %v774 = vsel %vm146, %v769, 0
  %776 = vmatpush.bf16.msra.mxu0 0
  %777 = vmatpush.bf16.msra.mxu0 0
  %778 = vmatpush.bf16.msra.mxu0 0
  %779 = vmatpush.bf16.msra.mxu0 0
  %780 = vmatpush.bf16.msra.mxu0 0
  %781 = vmatpush.bf16.msra.mxu0 0
  %782 = vmatpush.bf16.msra.mxu0 0
  %783 = vmatpush.bf16.msra.mxu0 %v771
  %784 = vmatmul.bf16.gmra.mxu0 %v774
  %v785 = vpop.f32.mrf.mxu0
  %v786 = vadd.f32 0.0, %v785
  %v787 = vpop.f32.mrf.mxu0
  %v788 = vadd.f32 0.0, %v787
  %789 = vdwg.mxu0
  %v790 = vpack.c.bf16 %v763, %v761
  %v791 = vpack.c.bf16 %v788, %v786
  %v793 = vsel %vm94, %v790, 0
  %v796 = vsel %vm94, %v791, 0
  %v799 = vsel %vm405, %v82, 0
  %801 = vmatpush.bf16.msra.mxu0 0
  %802 = vmatpush.bf16.msra.mxu0 0
  %803 = vmatpush.bf16.msra.mxu0 0
  %804 = vmatpush.bf16.msra.mxu0 0
  %805 = vmatpush.bf16.msra.mxu0 0
  %806 = vmatpush.bf16.msra.mxu0 0
  %807 = vmatpush.bf16.msra.mxu0 0
  %808 = vmatpush.bf16.msra.mxu0 %v799
  %809 = vmatmul.bf16.gmra.mxu0 %v793
  %v810 = vpop.f32.mrf.mxu0
  %v811 = vadd.f32 0.0, %v810
  %v812 = vpop.f32.mrf.mxu0
  %v813 = vadd.f32 0.0, %v812
  %814 = vmatmul.bf16.gmra.mxu0 %v796
  %v815 = vpop.f32.mrf.mxu0
  %v816 = vadd.f32 0.0, %v815
  %v817 = vpop.f32.mrf.mxu0
  %v818 = vadd.f32 0.0, %v817
  %819 = vdwg.mxu0
  %v820 = vadd.f32 %v636, %v811
  %v821 = vadd.f32 %v637, %v813
  %v822 = vadd.f32 %v638, %v816
  %v823 = vadd.f32 %v639, %v818
  %v824 = vld [vmem:[%s4] sm:$0x1]
  %v826 = vperm.slane %v824, 0
  %v828 = vadd.f32 %v820, %v826
  %v829 = vadd.f32 %v821, %v826
  %v830 = vadd.f32 %v822, %v826
  %v831 = vadd.f32 %v823, %v826
  %v832 = vadd.f32 %v828, %v27
  %v833 = vadd.f32 %v829, %v28
  %v834 = vadd.f32 %v830, %v29
  %v835 = vadd.f32 %v831, %v30
  %v836 = vld [vmem:[%s5] sm:$0x1]
  %v837 = vld [vmem:[%s6] sm:$0x1]
  %v838 = vsel %vm53, %v832, 0.0
  %839 = vadd.xlane.f32.xlu0 %v838
  %v840 = vpop.xlane.xlu0 %839
  %v841 = vsel %vm53, %v833, 0.0
  %842 = vadd.xlane.f32.xlu0 %v841
  %v843 = vpop.xlane.xlu0 %842
  %v844 = vsel %vm53, %v834, 0.0
  %845 = vadd.xlane.f32.xlu0 %v844
  %v846 = vpop.xlane.xlu0 %845
  %v847 = vsel %vm53, %v835, 0.0
  %848 = vadd.xlane.f32.xlu0 %v847
  %v849 = vpop.xlane.xlu0 %848
  %v850 = vrcp.pop 32.0
  %v851 = vmul.f32 32.0, %v850
  %v852 = vsub.f32 1.0, %v851
  %v853 = vmul.f32 %v850, %v852
  %v854 = vadd.f32 %v850, %v853
  %vm855 = vweird.f32 %v850
  %v856 = vsel %vm855, %v850, %v854
  %v857 = vmul.f32 %v840, %v856
  %v858 = vmul.f32 %v843, %v856
  %v859 = vmul.f32 %v846, %v856
  %v860 = vmul.f32 %v849, %v856
  %v861 = vsub.f32 %v832, %v857
  %v862 = vsub.f32 %v833, %v858
  %v863 = vsub.f32 %v834, %v859
  %v864 = vsub.f32 %v835, %v860
  %v865 = vmul.f32 %v861, %v861
  %v866 = vmul.f32 %v862, %v862
  %v867 = vmul.f32 %v863, %v863
  %v868 = vmul.f32 %v864, %v864
  %v869 = vsel %vm53, %v865, 0.0
  %870 = vadd.xlane.f32.xlu0 %v869
  %v871 = vpop.xlane.xlu0 %870
  %v872 = vsel %vm53, %v866, 0.0
  %873 = vadd.xlane.f32.xlu0 %v872
  %v874 = vpop.xlane.xlu0 %873
  %v875 = vsel %vm53, %v867, 0.0
  %876 = vadd.xlane.f32.xlu0 %v875
  %v877 = vpop.xlane.xlu0 %876
  %v878 = vsel %vm53, %v868, 0.0
  %879 = vadd.xlane.f32.xlu0 %v878
  %v880 = vpop.xlane.xlu0 %879
  %v881 = vmul.f32 %v871, %v856
  %v882 = vmul.f32 %v874, %v856
  %v883 = vmul.f32 %v877, %v856
  %v884 = vmul.f32 %v880, %v856
  %v885 = vadd.f32 %v881, 1e-05
  %v886 = vadd.f32 %v882, 1e-05
  %v887 = vadd.f32 %v883, 1e-05
  %v888 = vadd.f32 %v884, 1e-05
  %v889 = vrsqrt.pop %v885
  %v890 = vmul.f32 %v889, %v885
  %v891 = vmul.f32 %v890, %v889
  %v892 = vmul.f32 0.5, %v891
  %v893 = vsub.f32 1.5, %v892
  %v894 = vmul.f32 %v889, %v893
  %vm895 = vweird.f32 %v885
  %vm896 = vweird.f32 %v889
  %vm897 = vmor %vm895, %vm896
  %v898 = vsel %vm897, %v889, %v894
  %v899 = vrsqrt.pop %v886
  %v900 = vmul.f32 %v899, %v886
  %v901 = vmul.f32 %v900, %v899
  %v902 = vmul.f32 0.5, %v901
  %v903 = vsub.f32 1.5, %v902
  %v904 = vmul.f32 %v899, %v903
  %vm905 = vweird.f32 %v886
  %vm906 = vweird.f32 %v899
  %vm907 = vmor %vm905, %vm906
  %v908 = vsel %vm907, %v899, %v904
  %v909 = vrsqrt.pop %v887
  %v910 = vmul.f32 %v909, %v887
  %v911 = vmul.f32 %v910, %v909
  %v912 = vmul.f32 0.5, %v911
  %v913 = vsub.f32 1.5, %v912
  %v914 = vmul.f32 %v909, %v913
  %vm915 = vweird.f32 %v887
  %vm916 = vweird.f32 %v909
  %vm917 = vmor %vm915, %vm916
  %v918 = vsel %vm917, %v909, %v914
  %v919 = vrsqrt.pop %v888
  %v920 = vmul.f32 %v919, %v888
  %v921 = vmul.f32 %v920, %v919
  %v922 = vmul.f32 0.5, %v921
  %v923 = vsub.f32 1.5, %v922
  %v924 = vmul.f32 %v919, %v923
  %vm925 = vweird.f32 %v888
  %vm926 = vweird.f32 %v919
  %vm927 = vmor %vm925, %vm926
  %v928 = vsel %vm927, %v919, %v924
  %v929 = vmul.f32 %v861, %v898
  %v930 = vmul.f32 %v862, %v908
  %v931 = vmul.f32 %v863, %v918
  %v932 = vmul.f32 %v864, %v928
  %v934 = vperm.slane %v836, 0
  %v936 = vmul.f32 %v929, %v934
  %v937 = vmul.f32 %v930, %v934
  %v938 = vmul.f32 %v931, %v934
  %v939 = vmul.f32 %v932, %v934
  %v941 = vperm.slane %v837, 0
  %v943 = vadd.f32 %v936, %v941
  %v944 = vadd.f32 %v937, %v941
  %v945 = vadd.f32 %v938, %v941
  %v946 = vadd.f32 %v939, %v941
  %947 = vst.msk [vmem:[%s7] sm:$0xff] %vm53, %v943
  %948 = vst.msk [vmem:[%s7 + $0x8] sm:$0xff] %vm53, %v944
  %949 = vst.msk [vmem:[%s7 + $0x10] sm:$0xff] %vm53, %v945
  %950 = vst.msk [vmem:[%s7 + $0x18] sm:$0xff] %vm53, %v946
  // Predicated region
  $region30: #{fomc_forward.5} parent=0 // pred_check
    _
  $region31: #{fomc_forward.5} parent=0 // pred_check_branch
    %952 = sbr.rel (0) target = $region33
  $region32: #{fomc_forward.5} parent=0 // pred_region
    _
  $region33: #{fomc_forward.5} parent=0 // pred_fallthru
    _
  // Predicated region
  $region34: #{fomc_forward.5} parent=0 // pred_check
    _
  $region35: #{fomc_forward.5} parent=0 // pred_check_branch
    %954 = sbr.rel (0) target = $region37
  $region36: #{fomc_forward.5} parent=0 // pred_region
    _
  $region37: #{fomc_forward.5} parent=0 // pred_fallthru
    _

// kernel: fomc_forward.7
$region0: #{fomc_forward.7}
  #allocation0 [shape = 'u32[]', space=smem, size = 0x4, offset = 0x4, fixed_abs, tag = 'smem constant byte address 0x4 - core index']
  #allocation1 [shape = 'u32[72,128]{1,0:T(1,128)}', space=vmem, size = 0x9000, scoped, tag = 'internal scratch']
  %s0 = inlined_call_operand.vmem [shape: f32[2,32,16], index: 0, kind: input, shape index: {}]
  %s1 = inlined_call_operand.vmem [shape: bf16[32,32], index: 1, kind: input, shape index: {}]
  %s2 = inlined_call_operand.vmem [shape: f32[1,32], index: 2, kind: input, shape index: {}]
  %s3 = inlined_call_operand.vmem [shape: bf16[32,3], index: 3, kind: input, shape index: {}]
  %s4 = inlined_call_operand.vmem [shape: f32[1,3], index: 4, kind: input, shape index: {}]
  %s5 = inlined_call_operand.hbm [shape: f32[2,3], index: 5, kind: output, shape index: {}]
  %s6 = sld [smem:[#allocation0]]
  $region30: #{fomc_forward.7} parent=0
    _
  %s8 = ssub.s32 1, %s6
  %s9 = scalar_select 0, %s8, %s6
  $region1: #{fomc_forward.7} parent=0
    #allocation2 [shape = 'u8[1024]{0}', space=vmem, size = 0x400, scoped, tag = 'output window, operand 0, single buffered']
    #allocation3 [shape = 's32[1]{0}', space=sflag, size = 0x4, scoped, tag = 'scoped memory for fomc_forward.7']
    %10 = vsyncpa [#allocation3], 0
    // Predicated region
    $region2: #{fomc_forward.7} parent=1 // pred_check
      _
    $region3: #{fomc_forward.7} parent=1 // pred_check_branch
      %12 = sbr.rel (0) target = $region5
    $region4: #{fomc_forward.7} parent=1 // pred_region
      _
    $region5: #{fomc_forward.7} parent=1 // pred_fallthru
      _
    // Predicated region
    $region6: #{fomc_forward.7} parent=1 // pred_check
      _
    $region7: #{fomc_forward.7} parent=1 // pred_check_branch
      %14 = sbr.rel (0) target = $region9
    $region8: #{fomc_forward.7} parent=1 // pred_region
      _
    $region9: #{fomc_forward.7} parent=1 // pred_fallthru
      _
    // Predicated region
    $region10: #{fomc_forward.7} parent=1 // pred_check
      _
    $region11: #{fomc_forward.7} parent=1 // pred_check_branch
      %16 = sbr.rel (0) target = $region13
    $region12: #{fomc_forward.7} parent=1 // pred_region
      _
    $region13: #{fomc_forward.7} parent=1 // pred_fallthru
      _
    // Predicated region
    $region14: #{fomc_forward.7} parent=1 // pred_check
      _
    $region15: #{fomc_forward.7} parent=1 // pred_check_branch
      %18 = sbr.rel (0) target = $region17
    $region16: #{fomc_forward.7} parent=1 // pred_region
      _
    $region17: #{fomc_forward.7} parent=1 // pred_fallthru
      _
    // Predicated region
    $region18: #{fomc_forward.7} parent=1 // pred_check
      _
    $region19: #{fomc_forward.7} parent=1 // pred_check_branch
      %20 = sbr.rel (0) target = $region21
    $region20: #{fomc_forward.7} parent=1 // pred_region
      _
    $region21: #{fomc_forward.7} parent=1 // pred_fallthru
      _
    %v22 = vld [vmem:[%s0] sm:$0xff]
    %v23 = vld [vmem:[%s0 + $0x8] sm:$0xff]
    %v24 = vld [vmem:[%s0 + $0x10] sm:$0xff]
    %v25 = vld [vmem:[%s0 + $0x18] sm:$0xff]
    %v26 = vld [vmem:[%s0 + $0x20] sm:$0xff]
    %v27 = vld [vmem:[%s0 + $0x28] sm:$0xff]
    %v28 = vld [vmem:[%s0 + $0x30] sm:$0xff]
    %v29 = vld [vmem:[%s0 + $0x38] sm:$0xff]
    %vm30 = vcmask 130048
    %v31 = vsel %vm30, %v22, -inf
    %32 = vmax.xlane.f32.xlu0 %v31
    %v33 = vpop.xlane.xlu0 %32
    %v34 = vsel %vm30, %v23, -inf
    %35 = vmax.xlane.f32.xlu0 %v34
    %v36 = vpop.xlane.xlu0 %35
    %v37 = vsel %vm30, %v24, -inf
    %38 = vmax.xlane.f32.xlu0 %v37
    %v39 = vpop.xlane.xlu0 %38
    %v40 = vsel %vm30, %v25, -inf
    %41 = vmax.xlane.f32.xlu0 %v40
    %v42 = vpop.xlane.xlu0 %41
    %v43 = vsel %vm30, %v26, -inf
    %44 = vmax.xlane.f32.xlu0 %v43
    %v45 = vpop.xlane.xlu0 %44
    %v46 = vsel %vm30, %v27, -inf
    %47 = vmax.xlane.f32.xlu0 %v46
    %v48 = vpop.xlane.xlu0 %47
    %v49 = vsel %vm30, %v28, -inf
    %50 = vmax.xlane.f32.xlu0 %v49
    %v51 = vpop.xlane.xlu0 %50
    %v52 = vsel %vm30, %v29, -inf
    %53 = vmax.xlane.f32.xlu0 %v52
    %v54 = vpop.xlane.xlu0 %53
    %v55 = vmax.f32 %v33, 0.0
    %v56 = vmax.f32 %v36, 0.0
    %v57 = vmax.f32 %v39, 0.0
    %v58 = vmax.f32 %v42, 0.0
    %v59 = vmax.f32 %v45, 0.0
    %v60 = vmax.f32 %v48, 0.0
    %v61 = vmax.f32 %v51, 0.0
    %v62 = vmax.f32 %v54, 0.0
    %v63 = vpack.c.bf16 %v56, %v55
    %v64 = vpack.c.bf16 %v58, %v57
    %v65 = vpack.c.bf16 %v60, %v59
    %v66 = vpack.c.bf16 %v62, %v61
    %v67 = vld [vmem:[%s1] sm:$0xf]
    %v68 = vld [vmem:[%s1 + $0x4] sm:$0xf]
    %v69 = vld [vmem:[%s1 + $0x8] sm:$0xf]
    %v70 = vld [vmem:[%s1 + $0xc] sm:$0xf]
    %v71 = vld [vmem:[%s2] sm:$0x1]
    %v73 = vperm.slane %v71, 0
    %v79 = vunpack.c.l.b16 %v63
    %v80 = vunpack.c.h.b16 %v63
    %v81 = vunpack.c.l.b16 %v64
    %v82 = vunpack.c.h.b16 %v64
    %v83 = vunpack.c.l.b16 %v65
    %v84 = vunpack.c.h.b16 %v65
    %v85 = vunpack.c.l.b16 %v66
    %v86 = vunpack.c.h.b16 %v66
    %v87 = vlaneseq
    %v88 = vand.u32 %v87, 127
    %v89 = vperm.slane %v79, %v88
    %v90 = vadd.s32 %v88, 4294967288
    %v91 = vperm.slane %v80, %v90
    %vm92 = vcmask 130112
    %v93 = vsel %vm92, %v91, %v89
    %v94 = vadd.s32 %v88, 4294967280
    %v95 = vperm.slane %v81, %v94
    %vm96 = vcmask 195712
    %v97 = vsel %vm96, %v95, %v93
    %v98 = vadd.s32 %v88, 4294967272
    %v99 = vperm.slane %v82, %v98
    %vm100 = vcmask 261312
    %v101 = vsel %vm100, %v99, %v97
    %v102 = vperm.slane %v83, %v88
    %v103 = vperm.slane %v84, %v90
    %v104 = vsel %vm92, %v103, %v102
    %v105 = vperm.slane %v85, %v94
    %v106 = vsel %vm96, %v105, %v104
    %v107 = vperm.slane %v86, %v98
    %v108 = vsel %vm100, %v107, %v106
    %vm109 = vcmask 1041409
    %v110 = vsel %vm109, %v108, %v101
    %v111 = vpack.c.b16 %v110, %v110
    %v116 = vunpack.c.l.b16 %v67
    %v117 = vunpack.c.l.b16 %v68
    %v118 = vunpack.c.l.b16 %v69
    %v119 = vunpack.c.l.b16 %v70
    %v120 = vpack.c.b16 %v117, %v116
    %v121 = vpack.c.b16 %v119, %v118
    %vm124 = vcmask 261120
    %v126 = vsel %vm124, %v111, 0
    %128 = vmatpush.bf16.msra.mxu0 0
    %129 = vmatpush.bf16.msra.mxu0 0
    %130 = vmatpush.bf16.msra.mxu0 0
    %131 = vmatpush.bf16.msra.mxu0 0
    %132 = vmatpush.bf16.msra.mxu0 0
    %133 = vmatpush.bf16.msra.mxu0 0
    %134 = vmatpush.bf16.msra.mxu0 %v121
    %135 = vmatpush.bf16.msra.mxu0 %v120
    %136 = vmatmul.bf16.gmra.mxu0 %v126
    %v137 = vpop.f32.mrf.mxu0
    %v138 = vadd.f32 %v73, %v137
    %v139 = vpop.f32.mrf.mxu0
    %140 = vdwg.mxu0
    %v141 = vpack.c.bf16 %v138, %v138
    %v142 = vld [vmem:[%s3] sm:$0xf]
    %v143 = vld [vmem:[%s3 + $0x4] sm:$0xf]
    %v144 = vld [vmem:[%s3 + $0x8] sm:$0xf]
    %v145 = vld [vmem:[%s3 + $0xc] sm:$0xf]
    %v146 = vld [vmem:[%s4] sm:$0x1]
    %v148 = vperm.slane %v146, 0
    %v154 = vunpack.c.l.b16 %v142
    %v155 = vunpack.c.l.b16 %v143
    %v156 = vunpack.c.l.b16 %v144
    %v157 = vunpack.c.l.b16 %v145
    %v158 = vpack.c.b16 %v155, %v154
    %v159 = vpack.c.b16 %v157, %v156
    %v163 = vsel %vm124, %v141, 0
    %165 = vmatpush.bf16.msra.mxu0 0
    %166 = vmatpush.bf16.msra.mxu0 0
    %167 = vmatpush.bf16.msra.mxu0 0
    %168 = vmatpush.bf16.msra.mxu0 0
    %169 = vmatpush.bf16.msra.mxu0 0
    %170 = vmatpush.bf16.msra.mxu0 0
    %171 = vmatpush.bf16.msra.mxu0 %v159
    %172 = vmatpush.bf16.msra.mxu0 %v158
    %173 = vmatmul.bf16.gmra.mxu0 %v163
    %v174 = vpop.f32.mrf.mxu0
    %v175 = vadd.f32 %v148, %v174
    %v176 = vpop.f32.mrf.mxu0
    %177 = vdwg.mxu0
    %vm178 = vcmask 17408
    %179 = vst.msk [vmem:[#allocation2] sm:$0x3] %vm178, %v175
    // Predicated region
    $region22: #{fomc_forward.7} parent=1 // pred_check
      _
    $region23: #{fomc_forward.7} parent=1 // pred_check_branch
      %181 = sbr.rel (0) target = $region25
    $region24: #{fomc_forward.7} parent=1 // pred_region
      %183 = vsyncadd [#allocation3], 0
      %s185 = sshll.u32 [#allocation2], 4
      %s186 = int_to_ptr.vmem [resolvable:$true] %s185
      %s187 = sshll.u32 %s5, 4
      %s188 = int_to_ptr.hbm [resolvable:$true] %s187
      %190 = dma.vmem_to_hbm [thread:$0]  %s186, 32, %s188, [#allocation3]
    $region25: #{fomc_forward.7} parent=1 // pred_fallthru
      _
    // Predicated region
    $region26: #{fomc_forward.7} parent=1 // pred_check
      _
    $region27: #{fomc_forward.7} parent=1 // pred_check_branch
      %192 = sbr.rel (0) target = $region29
    $region28: #{fomc_forward.7} parent=1 // pred_region
      %194 = dma.done [#allocation3], 32
    $region29: #{fomc_forward.7} parent=1 // pred_fallthru
      _
    %195 = vsyncpa [#allocation3], 1

</llo_original>
